<compile_context>
chip_gen: v6e
topology: v6e:2x2x1
jax: 0.10.0
libtpu: 0.0.40
codegen_flags: <defaults>
</compile_context>

<pallas_src>
import jax
import jax.numpy as jnp
from jax.experimental import pallas as pl
from jax.experimental.pallas import tpu as pltpu


def _round_up(a, m):
    return -(-a // m) * m


def mlp_kernel(x_ref, w1_ref, b1_ref, w2_ref, b2_ref, w3_ref, b3_ref, o_ref,
               h1_ref, h2_ref):
    # Layer 1: cast the streamed f32 tile to bf16 right before the MXU pass,
    # [TB,3072]bf16 @ [3072,256]bf16 -> f32 accumulate, bias + ReLU in f32.
    x_bf = x_ref[...].astype(jnp.bfloat16)
    h1 = jnp.dot(x_bf, w1_ref[...], preferred_element_type=jnp.float32)
    h1 = jnp.maximum(h1 + b1_ref[...], 0.0)
    h1_ref[...] = h1.astype(jnp.bfloat16)          # stage in VMEM for the next MXU pass

    # Layer 2: Linear(256 -> 256) + ReLU.
    h2 = jnp.dot(h1_ref[...], w2_ref[...], preferred_element_type=jnp.float32)
    h2 = jnp.maximum(h2 + b2_ref[...], 0.0)
    h2_ref[...] = h2.astype(jnp.bfloat16)

    # Layer 3: Linear(256 -> 128-padded classes), no activation. Lane-dense bf16 store.
    out = jnp.dot(h2_ref[...], w3_ref[...], preferred_element_type=jnp.float32)
    o_ref[...] = (out + b3_ref[...]).astype(o_ref.dtype)


def mlp_forward(x, params, *, tb=512):
    """x: [B, 3, 32, 32] float32 (NCHW). Returns logits [B, num_classes] float32."""
    w1, b1, w2, b2, w3, b3 = params
    B = x.shape[0]
    in_dim, hidden = w1.shape
    num_classes = w3.shape[1]

    # Glue: flatten NCHW -> [B, C*H*W] (same ordering as nn.Flatten on NCHW).
    x_flat = x.reshape(B, in_dim)

    # Tile selection: never pad a tiny batch up to a full 512-row tile.
    tb = max(16, min(tb, _round_up(B, 16)))
    n_tiles = -(-B // tb)
    # v7x has 2 TensorCores sharing the 'parallel' batch axis: prefer >= 2 tiles
    # when the batch is big enough to split (harmless on v5e/v6e's single TC).
    if n_tiles == 1 and B >= 64:
        tb = _round_up(_round_up(B, 16) // 2, 16)
        n_tiles = -(-B // tb)
    b_pad = n_tiles * tb
    if b_pad != B:  # skip the pad copy entirely when already tile-aligned
        x_flat = jnp.pad(x_flat, ((0, b_pad - B), (0, 0)))

    # Pad the 10-wide classifier to 128 output lanes (zeros); slice back afterwards.
    n_out = _round_up(num_classes, 128)
    w3p = jnp.pad(w3, ((0, 0), (0, n_out - num_classes)))
    b3p = jnp.pad(b3, ((0, 0), (0, n_out - num_classes)))

    # bf16 weights for the MXU; x stays f32 and is cast inside the kernel.
    w1b = w1.astype(jnp.bfloat16)
    w2b = w2.astype(jnp.bfloat16)
    w3b = w3p.astype(jnp.bfloat16)

    # Resident (non-streamed) operands: constant block index, single-buffered.
    def resident(shape):
        zeros = (0,) * len(shape)
        return pl.BlockSpec(shape, lambda i, z=zeros: z, pipeline_mode=pl.Buffered(1))

    # Right-size the VMEM budget: 2x f32 x tiles + 2x bf16 out tiles + h1/h2 scratch
    # + single-buffered bf16 weights, with headroom for compiler scratch.
    vmem_bytes = (
        2 * tb * in_dim * 4                                   # double-buffered f32 x tiles
        + 2 * tb * n_out * 2                                  # double-buffered bf16 out tiles
        + 2 * tb * hidden * 2                                 # h1/h2 bf16 scratch
        + (in_dim * hidden + hidden * hidden + hidden * n_out) * 2  # bf16 weights
        + (2 * hidden + n_out) * 4                            # f32 biases
    )
    vmem_limit = int(min(96 << 20, max(16 << 20, int(vmem_bytes * 1.25) + (2 << 20))))

    out_padded = pl.pallas_call(
        mlp_kernel,
        out_shape=jax.ShapeDtypeStruct((b_pad, n_out), jnp.bfloat16),
        grid_spec=pltpu.PrefetchScalarGridSpec(
            num_scalar_prefetch=0,
            grid=(n_tiles,),
            in_specs=[
                pl.BlockSpec((tb, in_dim), lambda i: (i, 0)),   # stream f32 x tiles
                resident((in_dim, hidden)), resident((1, hidden)),   # w1, b1 (VMEM-resident)
                resident((hidden, hidden)), resident((1, hidden)),   # w2, b2
                resident((hidden, n_out)), resident((1, n_out)),     # w3, b3 (lane-padded)
            ],
            out_specs=pl.BlockSpec((tb, n_out), lambda i: (i, 0)),
            scratch_shapes=[
                pltpu.VMEM((tb, hidden), jnp.bfloat16),          # h1 staging
                pltpu.VMEM((tb, hidden), jnp.bfloat16),          # h2 staging
            ],
        ),
        compiler_params=pltpu.CompilerParams(
            dimension_semantics=("parallel",),   # v7x: shard batch tiles across both TCs
            vmem_limit_bytes=vmem_limit,
        ),
    )(x_flat, w1b, b1, w2b, b2, w3b, b3p)

    # Slice off batch/class padding and upcast the bf16 logits for downstream use.
    return out_padded[:B, :num_classes].astype(jnp.float32)


def init_params(key, in_dim=3 * 32 * 32, hidden=256, num_classes=10):
    """Deterministic init mimicking PyTorch nn.Linear default U(-1/sqrt(fan_in), 1/sqrt(fan_in))."""
    ks = jax.random.split(key, 6)

    def linear(kw, kb, fan_in, fan_out):
        bound = 1.0 / jnp.sqrt(jnp.float32(fan_in))
        w = jax.random.uniform(kw, (fan_in, fan_out), jnp.float32, -bound, bound)
        b = jax.random.uniform(kb, (1, fan_out), jnp.float32, -bound, bound)
        return w, b

    w1, b1 = linear(ks[0], ks[1], in_dim, hidden)
    w2, b2 = linear(ks[2], ks[3], hidden, hidden)
    w3, b3 = linear(ks[4], ks[5], hidden, num_classes)
    return (w1, b1, w2, b2, w3, b3)


if __name__ == "__main__":
    key = jax.random.PRNGKey(0)
    k_x, k_p = jax.random.split(key)

    B = 2
    x = jax.random.normal(k_x, (B, 3, 32, 32), jnp.float32)  # NCHW input
    params = init_params(k_p)

    logits = mlp_forward(x, params)
    jax.block_until_ready(logits)

    # Sanity check against pure-JAX f32 reference of the same math
    # (kernel uses bf16 operands/intermediates with f32 accumulation -> loose tolerance).
    w1, b1, w2, b2, w3, b3 = params
    xf = x.reshape(B, -1)
    ref = jnp.maximum(xf @ w1 + b1, 0.0)
    ref = jnp.maximum(ref @ w2 + b2, 0.0)
    ref = ref @ w3 + b3

    assert logits.shape == (B, 10)
    assert jnp.allclose(logits, ref, atol=5e-2, rtol=5e-2)

    print("KERNEL_OK")
</pallas_src>

<mosaic_0001>
module attributes {stable_mosaic.version = 11 : i64} {
  func.func @mlp_kernel(%arg0: i32, %arg1: memref<16x3072xf32, #tpu.memory_space<vmem>>, %arg2: memref<3072x256xbf16, #tpu.memory_space<vmem>>, %arg3: memref<1x256xf32, #tpu.memory_space<vmem>>, %arg4: memref<256x256xbf16, #tpu.memory_space<vmem>>, %arg5: memref<1x256xf32, #tpu.memory_space<vmem>>, %arg6: memref<256x128xbf16, #tpu.memory_space<vmem>>, %arg7: memref<1x128xf32, #tpu.memory_space<vmem>>, %arg8: memref<16x128xbf16, #tpu.memory_space<vmem>>, %arg9: memref<16x256xbf16, #tpu.memory_space<vmem>>, %arg10: memref<16x256xbf16, #tpu.memory_space<vmem>>) attributes {dimension_semantics = [#tpu.dimension_semantics<parallel>], iteration_bounds = array<i64: 1>, scalar_prefetch = 0 : i64, scratch_operands = 2 : i64, tpu.core_type = #tpu.core_type<tc>, window_params = [{transform_indices = @transform_0, window_bounds = array<i64: 16, 3072>}, {pipeline_mode = #tpu.pipeline_mode<synchronous>, transform_indices = @transform_1, window_bounds = array<i64: 3072, 256>}, {pipeline_mode = #tpu.pipeline_mode<synchronous>, transform_indices = @transform_2, window_bounds = array<i64: 1, 256>}, {pipeline_mode = #tpu.pipeline_mode<synchronous>, transform_indices = @transform_3, window_bounds = array<i64: 256, 256>}, {pipeline_mode = #tpu.pipeline_mode<synchronous>, transform_indices = @transform_4, window_bounds = array<i64: 1, 256>}, {pipeline_mode = #tpu.pipeline_mode<synchronous>, transform_indices = @transform_5, window_bounds = array<i64: 256, 128>}, {pipeline_mode = #tpu.pipeline_mode<synchronous>, transform_indices = @transform_6, window_bounds = array<i64: 1, 128>}, {transform_indices = @transform_7, window_bounds = array<i64: 16, 128>}]} {
    %c0 = arith.constant 0 : index
    %c0_0 = arith.constant 0 : index
    %0 = vector.load %arg1[%c0, %c0_0] : memref<16x3072xf32, #tpu.memory_space<vmem>>, vector<16x3072xf32>
    %1 = arith.truncf %0 : vector<16x3072xf32> to vector<16x3072xbf16>
    %c0_1 = arith.constant 0 : index
    %c0_2 = arith.constant 0 : index
    %2 = vector.load %arg2[%c0_1, %c0_2] : memref<3072x256xbf16, #tpu.memory_space<vmem>>, vector<3072x256xbf16>
    %cst = arith.constant dense<0.000000e+00> : vector<16x256xf32>
    %3 = tpu.matmul %1, %2, %cst {dimension_numbers = #tpu.dot_dimension_numbers<[1], [0], [0], [1], [0, 0, 1, 1], [], []>} : vector<16x3072xbf16>, vector<3072x256xbf16>, vector<16x256xf32> -> vector<16x256xf32>
    %c0_3 = arith.constant 0 : index
    %c0_4 = arith.constant 0 : index
    %4 = vector.load %arg3[%c0_3, %c0_4] : memref<1x256xf32, #tpu.memory_space<vmem>>, vector<1x256xf32>
    %5 = vector.broadcast %4 : vector<1x256xf32> to vector<16x256xf32>
    %6 = arith.addf %3, %5 : vector<16x256xf32>
    %cst_5 = arith.constant 0.000000e+00 : f32
    %7 = vector.broadcast %cst_5 : f32 to vector<16x256xf32>
    %8 = arith.maximumf %6, %7 : vector<16x256xf32>
    %9 = arith.truncf %8 : vector<16x256xf32> to vector<16x256xbf16>
    %c0_6 = arith.constant 0 : index
    %c0_7 = arith.constant 0 : index
    %10 = vector.load %arg9[%c0_6, %c0_7] : memref<16x256xbf16, #tpu.memory_space<vmem>>, vector<16x256xbf16>
    tpu.vector_store %arg9[%c0_6, %c0_7], %9 {strides = array<i32>} : memref<16x256xbf16, #tpu.memory_space<vmem>>, vector<16x256xbf16>,
    %c0_8 = arith.constant 0 : index
    %c0_9 = arith.constant 0 : index
    %11 = vector.load %arg9[%c0_8, %c0_9] : memref<16x256xbf16, #tpu.memory_space<vmem>>, vector<16x256xbf16>
    %c0_10 = arith.constant 0 : index
    %c0_11 = arith.constant 0 : index
    %12 = vector.load %arg4[%c0_10, %c0_11] : memref<256x256xbf16, #tpu.memory_space<vmem>>, vector<256x256xbf16>
    %cst_12 = arith.constant dense<0.000000e+00> : vector<16x256xf32>
    %13 = tpu.matmul %11, %12, %cst_12 {dimension_numbers = #tpu.dot_dimension_numbers<[1], [0], [0], [1], [0, 0, 1, 1], [], []>} : vector<16x256xbf16>, vector<256x256xbf16>, vector<16x256xf32> -> vector<16x256xf32>
    %c0_13 = arith.constant 0 : index
    %c0_14 = arith.constant 0 : index
    %14 = vector.load %arg5[%c0_13, %c0_14] : memref<1x256xf32, #tpu.memory_space<vmem>>, vector<1x256xf32>
    %15 = vector.broadcast %14 : vector<1x256xf32> to vector<16x256xf32>
    %16 = arith.addf %13, %15 : vector<16x256xf32>
    %cst_15 = arith.constant 0.000000e+00 : f32
    %17 = vector.broadcast %cst_15 : f32 to vector<16x256xf32>
    %18 = arith.maximumf %16, %17 : vector<16x256xf32>
    %19 = arith.truncf %18 : vector<16x256xf32> to vector<16x256xbf16>
    %c0_16 = arith.constant 0 : index
    %c0_17 = arith.constant 0 : index
    %20 = vector.load %arg10[%c0_16, %c0_17] : memref<16x256xbf16, #tpu.memory_space<vmem>>, vector<16x256xbf16>
    tpu.vector_store %arg10[%c0_16, %c0_17], %19 {strides = array<i32>} : memref<16x256xbf16, #tpu.memory_space<vmem>>, vector<16x256xbf16>,
    %c0_18 = arith.constant 0 : index
    %c0_19 = arith.constant 0 : index
    %21 = vector.load %arg10[%c0_18, %c0_19] : memref<16x256xbf16, #tpu.memory_space<vmem>>, vector<16x256xbf16>
    %c0_20 = arith.constant 0 : index
    %c0_21 = arith.constant 0 : index
    %22 = vector.load %arg6[%c0_20, %c0_21] : memref<256x128xbf16, #tpu.memory_space<vmem>>, vector<256x128xbf16>
    %cst_22 = arith.constant dense<0.000000e+00> : vector<16x128xf32>
    %23 = tpu.matmul %21, %22, %cst_22 {dimension_numbers = #tpu.dot_dimension_numbers<[1], [0], [0], [1], [0, 0, 1, 1], [], []>} : vector<16x256xbf16>, vector<256x128xbf16>, vector<16x128xf32> -> vector<16x128xf32>
    %c0_23 = arith.constant 0 : index
    %c0_24 = arith.constant 0 : index
    %24 = vector.load %arg7[%c0_23, %c0_24] : memref<1x128xf32, #tpu.memory_space<vmem>>, vector<1x128xf32>
    %25 = vector.broadcast %24 : vector<1x128xf32> to vector<16x128xf32>
    %26 = arith.addf %23, %25 : vector<16x128xf32>
    %27 = arith.truncf %26 : vector<16x128xf32> to vector<16x128xbf16>
    %c0_25 = arith.constant 0 : index
    %c0_26 = arith.constant 0 : index
    %28 = vector.load %arg8[%c0_25, %c0_26] : memref<16x128xbf16, #tpu.memory_space<vmem>>, vector<16x128xbf16>
    tpu.vector_store %arg8[%c0_25, %c0_26], %27 {strides = array<i32>} : memref<16x128xbf16, #tpu.memory_space<vmem>>, vector<16x128xbf16>,
    return
  }
  func.func @transform_0(%arg0: i32) -> (i32, i32) {
    %c0_i32 = arith.constant 0 : i32
    %c0_i32_0 = arith.constant 0 : i32
    return %arg0, %c0_i32 : i32, i32
  }
  func.func @transform_1(%arg0: i32) -> (i32, i32) {
    %c0_i32 = arith.constant 0 : i32
    %c0_i32_0 = arith.constant 0 : i32
    %c0_i32_1 = arith.constant 0 : i32
    return %c0_i32, %c0_i32_0 : i32, i32
  }
  func.func @transform_2(%arg0: i32) -> (i32, i32) {
    %c0_i32 = arith.constant 0 : i32
    %c0_i32_0 = arith.constant 0 : i32
    %c0_i32_1 = arith.constant 0 : i32
    return %c0_i32, %c0_i32_0 : i32, i32
  }
  func.func @transform_3(%arg0: i32) -> (i32, i32) {
    %c0_i32 = arith.constant 0 : i32
    %c0_i32_0 = arith.constant 0 : i32
    %c0_i32_1 = arith.constant 0 : i32
    return %c0_i32, %c0_i32_0 : i32, i32
  }
  func.func @transform_4(%arg0: i32) -> (i32, i32) {
    %c0_i32 = arith.constant 0 : i32
    %c0_i32_0 = arith.constant 0 : i32
    %c0_i32_1 = arith.constant 0 : i32
    return %c0_i32, %c0_i32_0 : i32, i32
  }
  func.func @transform_5(%arg0: i32) -> (i32, i32) {
    %c0_i32 = arith.constant 0 : i32
    %c0_i32_0 = arith.constant 0 : i32
    %c0_i32_1 = arith.constant 0 : i32
    return %c0_i32, %c0_i32_0 : i32, i32
  }
  func.func @transform_6(%arg0: i32) -> (i32, i32) {
    %c0_i32 = arith.constant 0 : i32
    %c0_i32_0 = arith.constant 0 : i32
    %c0_i32_1 = arith.constant 0 : i32
    return %c0_i32, %c0_i32_0 : i32, i32
  }
  func.func @transform_7(%arg0: i32) -> (i32, i32) {
    %c0_i32 = arith.constant 0 : i32
    %c0_i32_0 = arith.constant 0 : i32
    return %arg0, %c0_i32 : i32, i32
  }
}

</mosaic_0001>

<llo_original>
// kernel: tpu_custom_call.1
$region0: #{tpu_custom_call.1}
  #allocation0 [shape = 'u32[]', space=smem, size = 0x4, offset = 0x4, fixed_abs, tag = 'smem constant byte address 0x4 - core index']
  #allocation1 [shape = 'u32[144,128]{1,0:T(1,128)}', space=vmem, size = 0x12000, scoped, tag = 'internal scratch']
  #allocation2 [shape = 'bf16[16,256]{1,0:T(8,128)(2,1)}', space=vmem, size = 0x2000, scoped, tag = 'scratch operand']
  #allocation3 [shape = 'bf16[16,256]{1,0:T(8,128)(2,1)}', space=vmem, size = 0x2000, scoped, tag = 'scratch operand']
  %s0 = inlined_call_operand.hbm [shape: f32[16,3072], index: 0, kind: input, shape index: {}]
  %s1 = inlined_call_operand.hbm [shape: bf16[3072,256], index: 1, kind: input, shape index: {}]
  %s2 = inlined_call_operand.hbm [shape: f32[1,256], index: 2, kind: input, shape index: {}]
  %s3 = inlined_call_operand.hbm [shape: bf16[256,256], index: 3, kind: input, shape index: {}]
  %s4 = inlined_call_operand.hbm [shape: f32[1,256], index: 4, kind: input, shape index: {}]
  %s5 = inlined_call_operand.hbm [shape: bf16[256,128], index: 5, kind: input, shape index: {}]
  %s6 = inlined_call_operand.hbm [shape: f32[1,128], index: 6, kind: input, shape index: {}]
  %s7 = inlined_call_operand.hbm [shape: bf16[16,128], index: 7, kind: output, shape index: {}]
  %s8 = sld [smem:[#allocation0]]
  $region66: #{tpu_custom_call.1} parent=0
    _
  %s10 = ssub.s32 1, %s8
  %s11 = scalar_select 0, %s10, %s8
  $region1: #{tpu_custom_call.1} parent=0
    #allocation4 [shape = 'u8[196608]{0}', space=vmem, size = 0x30000, scoped, tag = 'input window, operand 0, single buffered']
    #allocation5 [shape = 's32[1]{0}', space=sflag, size = 0x4, scoped, tag = 'scoped memory for tpu_custom_call.1']
    #allocation6 [shape = 's32[1]{0}', space=sflag, size = 0x4, scoped, tag = 'scoped memory for tpu_custom_call.1']
    #allocation7 [shape = 'u8[1572864]{0}', space=vmem, size = 0x180000, scoped, tag = 'input window, operand 1, single buffered']
    #allocation8 [shape = 's32[1]{0}', space=sflag, size = 0x4, scoped, tag = 'scoped memory for tpu_custom_call.1']
    #allocation9 [shape = 'u8[1024]{0}', space=vmem, size = 0x400, scoped, tag = 'input window, operand 2, single buffered']
    #allocation10 [shape = 'u8[131072]{0}', space=vmem, size = 0x20000, scoped, tag = 'input window, operand 3, single buffered']
    #allocation11 [shape = 's32[1]{0}', space=sflag, size = 0x4, scoped, tag = 'scoped memory for tpu_custom_call.1']
    #allocation12 [shape = 'u8[1024]{0}', space=vmem, size = 0x400, scoped, tag = 'input window, operand 4, single buffered']
    #allocation13 [shape = 'u8[65536]{0}', space=vmem, size = 0x10000, scoped, tag = 'input window, operand 5, single buffered']
    #allocation14 [shape = 's32[1]{0}', space=sflag, size = 0x4, scoped, tag = 'scoped memory for tpu_custom_call.1']
    #allocation15 [shape = 'u8[512]{0}', space=vmem, size = 0x400, scoped, tag = 'input window, operand 6, single buffered']
    #allocation16 [shape = 'u8[4096]{0}', space=vmem, size = 0x1000, scoped, tag = 'output window, operand 0, single buffered']
    %12 = vsyncpa [#allocation5], 0
    %13 = vsyncpa [#allocation8], 0
    %14 = vsyncpa [#allocation11], 0
    %15 = vsyncpa [#allocation14], 0
    %16 = vsyncpa [#allocation6], 0
    // Predicated region
    $region2: #{tpu_custom_call.1} parent=1 // pred_check
      _
    $region3: #{tpu_custom_call.1} parent=1 // pred_check_branch
      %18 = sbr.rel (0) target = $region5
    $region4: #{tpu_custom_call.1} parent=1 // pred_region
      %s20 = ssub.s32 6144, 6144
      %21 = vsyncadd [#allocation5], %s20
      %s22 = sshll.u32 [#allocation4], 4
      %s23 = int_to_ptr.vmem [resolvable:$true] %s22
      %28 = dma.hbm_to_vmem [thread:$0]  %s0, 6144, %s23, [#allocation5], 3072, 3072, 192
    $region5: #{tpu_custom_call.1} parent=1 // pred_fallthru
      _
    // Predicated region
    $region6: #{tpu_custom_call.1} parent=1 // pred_check
      _
    $region7: #{tpu_custom_call.1} parent=1 // pred_check_branch
      %30 = sbr.rel (0) target = $region9
    $region8: #{tpu_custom_call.1} parent=1 // pred_region
      %s32 = ssub.s32 49152, 49152
      %33 = vsyncadd [#allocation8], %s32
      %s34 = sshll.u32 [#allocation7], 4
      %s35 = int_to_ptr.vmem [resolvable:$true] %s34
      %40 = dma.hbm_to_vmem [thread:$0]  %s1, 49152, %s35, [#allocation8], 128, 128, 8
    $region9: #{tpu_custom_call.1} parent=1 // pred_fallthru
      _
    // Predicated region
    $region10: #{tpu_custom_call.1} parent=1 // pred_check
      _
    $region11: #{tpu_custom_call.1} parent=1 // pred_check_branch
      %42 = sbr.rel (0) target = $region13
    $region12: #{tpu_custom_call.1} parent=1 // pred_region
      %s44 = ssub.s32 32, 32
      %45 = vsyncadd [#allocation8], %s44
      %s47 = sshll.u32 [#allocation9], 4
      %s48 = int_to_ptr.vmem [resolvable:$true] %s47
      %50 = dma.hbm_to_vmem [thread:$0]  %s2, 32, %s48, [#allocation8]
    $region13: #{tpu_custom_call.1} parent=1 // pred_fallthru
      _
    // Predicated region
    $region14: #{tpu_custom_call.1} parent=1 // pred_check
      _
    $region15: #{tpu_custom_call.1} parent=1 // pred_check_branch
      %52 = sbr.rel (0) target = $region17
    $region16: #{tpu_custom_call.1} parent=1 // pred_region
      %s54 = ssub.s32 4096, 4096
      %55 = vsyncadd [#allocation11], %s54
      %s56 = sshll.u32 [#allocation10], 4
      %s57 = int_to_ptr.vmem [resolvable:$true] %s56
      %62 = dma.hbm_to_vmem [thread:$0]  %s3, 4096, %s57, [#allocation11], 128, 128, 8
    $region17: #{tpu_custom_call.1} parent=1 // pred_fallthru
      _
    // Predicated region
    $region18: #{tpu_custom_call.1} parent=1 // pred_check
      _
    $region19: #{tpu_custom_call.1} parent=1 // pred_check_branch
      %64 = sbr.rel (0) target = $region21
    $region20: #{tpu_custom_call.1} parent=1 // pred_region
      %s66 = ssub.s32 32, 32
      %67 = vsyncadd [#allocation11], %s66
      %s69 = sshll.u32 [#allocation12], 4
      %s70 = int_to_ptr.vmem [resolvable:$true] %s69
      %72 = dma.hbm_to_vmem [thread:$0]  %s4, 32, %s70, [#allocation11]
    $region21: #{tpu_custom_call.1} parent=1 // pred_fallthru
      _
    // Predicated region
    $region22: #{tpu_custom_call.1} parent=1 // pred_check
      _
    $region23: #{tpu_custom_call.1} parent=1 // pred_check_branch
      %74 = sbr.rel (0) target = $region25
    $region24: #{tpu_custom_call.1} parent=1 // pred_region
      %s76 = ssub.s32 2048, 2048
      %77 = vsyncadd [#allocation14], %s76
      %s78 = sshll.u32 [#allocation13], 4
      %s79 = int_to_ptr.vmem [resolvable:$true] %s78
      %84 = dma.hbm_to_vmem [thread:$0]  %s5, 2048, %s79, [#allocation14], 64, 64, 4
    $region25: #{tpu_custom_call.1} parent=1 // pred_fallthru
      _
    // Predicated region
    $region26: #{tpu_custom_call.1} parent=1 // pred_check
      _
    $region27: #{tpu_custom_call.1} parent=1 // pred_check_branch
      %86 = sbr.rel (0) target = $region29
    $region28: #{tpu_custom_call.1} parent=1 // pred_region
      %s88 = ssub.s32 16, 16
      %89 = vsyncadd [#allocation14], %s88
      %s91 = sshll.u32 [#allocation15], 4
      %s92 = int_to_ptr.vmem [resolvable:$true] %s91
      %94 = dma.hbm_to_vmem [thread:$0]  %s6, 16, %s92, [#allocation14]
    $region29: #{tpu_custom_call.1} parent=1 // pred_fallthru
      _
    // Predicated region
    $region30: #{tpu_custom_call.1} parent=1 // pred_check
      _
    $region31: #{tpu_custom_call.1} parent=1 // pred_check_branch
      %96 = sbr.rel (0) target = $region33
    $region32: #{tpu_custom_call.1} parent=1 // pred_region
      %97 = dma.done [#allocation5], 6144
    $region33: #{tpu_custom_call.1} parent=1 // pred_fallthru
      _
    // Predicated region
    $region34: #{tpu_custom_call.1} parent=1 // pred_check
      _
    $region35: #{tpu_custom_call.1} parent=1 // pred_check_branch
      %99 = sbr.rel (0) target = $region37
    $region36: #{tpu_custom_call.1} parent=1 // pred_region
      %100 = dma.done [#allocation8], 49152
    $region37: #{tpu_custom_call.1} parent=1 // pred_fallthru
      _
    // Predicated region
    $region38: #{tpu_custom_call.1} parent=1 // pred_check
      _
    $region39: #{tpu_custom_call.1} parent=1 // pred_check_branch
      %102 = sbr.rel (0) target = $region41
    $region40: #{tpu_custom_call.1} parent=1 // pred_region
      %103 = dma.done [#allocation8], 32
    $region41: #{tpu_custom_call.1} parent=1 // pred_fallthru
      _
    // Predicated region
    $region42: #{tpu_custom_call.1} parent=1 // pred_check
      _
    $region43: #{tpu_custom_call.1} parent=1 // pred_check_branch
      %105 = sbr.rel (0) target = $region45
    $region44: #{tpu_custom_call.1} parent=1 // pred_region
      %106 = dma.done [#allocation11], 4096
    $region45: #{tpu_custom_call.1} parent=1 // pred_fallthru
      _
    // Predicated region
    $region46: #{tpu_custom_call.1} parent=1 // pred_check
      _
    $region47: #{tpu_custom_call.1} parent=1 // pred_check_branch
      %108 = sbr.rel (0) target = $region49
    $region48: #{tpu_custom_call.1} parent=1 // pred_region
      %109 = dma.done [#allocation11], 32
    $region49: #{tpu_custom_call.1} parent=1 // pred_fallthru
      _
    // Predicated region
    $region50: #{tpu_custom_call.1} parent=1 // pred_check
      _
    $region51: #{tpu_custom_call.1} parent=1 // pred_check_branch
      %111 = sbr.rel (0) target = $region53
    $region52: #{tpu_custom_call.1} parent=1 // pred_region
      %112 = dma.done [#allocation14], 2048
    $region53: #{tpu_custom_call.1} parent=1 // pred_fallthru
      _
    // Predicated region
    $region54: #{tpu_custom_call.1} parent=1 // pred_check
      _
    $region55: #{tpu_custom_call.1} parent=1 // pred_check_branch
      %114 = sbr.rel (0) target = $region57
    $region56: #{tpu_custom_call.1} parent=1 // pred_region
      %115 = dma.done [#allocation14], 16
    $region57: #{tpu_custom_call.1} parent=1 // pred_fallthru
      _
    %v117 = vld [vmem:[#allocation4] sm:$0xff]
    %v118 = vld [vmem:[#allocation4 + $0x8] sm:$0xff]
    %v119 = vld [vmem:[#allocation4 + $0x10] sm:$0xff]
    %v120 = vld [vmem:[#allocation4 + $0x18] sm:$0xff]
    %v121 = vld [vmem:[#allocation4 + $0x20] sm:$0xff]
    %v122 = vld [vmem:[#allocation4 + $0x28] sm:$0xff]
    %v123 = vld [vmem:[#allocation4 + $0x30] sm:$0xff]
    %v124 = vld [vmem:[#allocation4 + $0x38] sm:$0xff]
    %v125 = vld [vmem:[#allocation4 + $0x40] sm:$0xff]
    %v126 = vld [vmem:[#allocation4 + $0x48] sm:$0xff]
    %v127 = vld [vmem:[#allocation4 + $0x50] sm:$0xff]
    %v128 = vld [vmem:[#allocation4 + $0x58] sm:$0xff]
    %v129 = vld [vmem:[#allocation4 + $0x60] sm:$0xff]
    %v130 = vld [vmem:[#allocation4 + $0x68] sm:$0xff]
    %v131 = vld [vmem:[#allocation4 + $0x70] sm:$0xff]
    %v132 = vld [vmem:[#allocation4 + $0x78] sm:$0xff]
    %v133 = vld [vmem:[#allocation4 + $0x80] sm:$0xff]
    %v134 = vld [vmem:[#allocation4 + $0x88] sm:$0xff]
    %v135 = vld [vmem:[#allocation4 + $0x90] sm:$0xff]
    %v136 = vld [vmem:[#allocation4 + $0x98] sm:$0xff]
    %v137 = vld [vmem:[#allocation4 + $0xa0] sm:$0xff]
    %v138 = vld [vmem:[#allocation4 + $0xa8] sm:$0xff]
    %v139 = vld [vmem:[#allocation4 + $0xb0] sm:$0xff]
    %v140 = vld [vmem:[#allocation4 + $0xb8] sm:$0xff]
    %v141 = vld [vmem:[#allocation4 + $0xc0] sm:$0xff]
    %v142 = vld [vmem:[#allocation4 + $0xc8] sm:$0xff]
    %v143 = vld [vmem:[#allocation4 + $0xd0] sm:$0xff]
    %v144 = vld [vmem:[#allocation4 + $0xd8] sm:$0xff]
    %v145 = vld [vmem:[#allocation4 + $0xe0] sm:$0xff]
    %v146 = vld [vmem:[#allocation4 + $0xe8] sm:$0xff]
    %v147 = vld [vmem:[#allocation4 + $0xf0] sm:$0xff]
    %v148 = vld [vmem:[#allocation4 + $0xf8] sm:$0xff]
    %v149 = vld [vmem:[#allocation4 + $0x100] sm:$0xff]
    %v150 = vld [vmem:[#allocation4 + $0x108] sm:$0xff]
    %v151 = vld [vmem:[#allocation4 + $0x110] sm:$0xff]
    %v152 = vld [vmem:[#allocation4 + $0x118] sm:$0xff]
    %v153 = vld [vmem:[#allocation4 + $0x120] sm:$0xff]
    %v154 = vld [vmem:[#allocation4 + $0x128] sm:$0xff]
    %v155 = vld [vmem:[#allocation4 + $0x130] sm:$0xff]
    %v156 = vld [vmem:[#allocation4 + $0x138] sm:$0xff]
    %v157 = vld [vmem:[#allocation4 + $0x140] sm:$0xff]
    %v158 = vld [vmem:[#allocation4 + $0x148] sm:$0xff]
    %v159 = vld [vmem:[#allocation4 + $0x150] sm:$0xff]
    %v160 = vld [vmem:[#allocation4 + $0x158] sm:$0xff]
    %v161 = vld [vmem:[#allocation4 + $0x160] sm:$0xff]
    %v162 = vld [vmem:[#allocation4 + $0x168] sm:$0xff]
    %v163 = vld [vmem:[#allocation4 + $0x170] sm:$0xff]
    %v164 = vld [vmem:[#allocation4 + $0x178] sm:$0xff]
    %v165 = vpack.c.bf16 %v141, %v117
    %v166 = vpack.c.bf16 %v142, %v118
    %v167 = vpack.c.bf16 %v143, %v119
    %v168 = vpack.c.bf16 %v144, %v120
    %v169 = vpack.c.bf16 %v145, %v121
    %v170 = vpack.c.bf16 %v146, %v122
    %v171 = vpack.c.bf16 %v147, %v123
    %v172 = vpack.c.bf16 %v148, %v124
    %v173 = vpack.c.bf16 %v149, %v125
    %v174 = vpack.c.bf16 %v150, %v126
    %v175 = vpack.c.bf16 %v151, %v127
    %v176 = vpack.c.bf16 %v152, %v128
    %v177 = vpack.c.bf16 %v153, %v129
    %v178 = vpack.c.bf16 %v154, %v130
    %v179 = vpack.c.bf16 %v155, %v131
    %v180 = vpack.c.bf16 %v156, %v132
    %v181 = vpack.c.bf16 %v157, %v133
    %v182 = vpack.c.bf16 %v158, %v134
    %v183 = vpack.c.bf16 %v159, %v135
    %v184 = vpack.c.bf16 %v160, %v136
    %v185 = vpack.c.bf16 %v161, %v137
    %v186 = vpack.c.bf16 %v162, %v138
    %v187 = vpack.c.bf16 %v163, %v139
    %v188 = vpack.c.bf16 %v164, %v140
    %v189 = vld [vmem:[#allocation7] sm:$0xff]
    %v190 = vld [vmem:[#allocation7 + $0x8] sm:$0xff]
    %v191 = vld [vmem:[#allocation7 + $0x10] sm:$0xff]
    %v192 = vld [vmem:[#allocation7 + $0x18] sm:$0xff]
    %v193 = vld [vmem:[#allocation7 + $0x20] sm:$0xff]
    %v194 = vld [vmem:[#allocation7 + $0x28] sm:$0xff]
    %v195 = vld [vmem:[#allocation7 + $0x30] sm:$0xff]
    %v196 = vld [vmem:[#allocation7 + $0x38] sm:$0xff]
    %v197 = vld [vmem:[#allocation7 + $0x40] sm:$0xff]
    %v198 = vld [vmem:[#allocation7 + $0x48] sm:$0xff]
    %v199 = vld [vmem:[#allocation7 + $0x50] sm:$0xff]
    %v200 = vld [vmem:[#allocation7 + $0x58] sm:$0xff]
    %v201 = vld [vmem:[#allocation7 + $0x60] sm:$0xff]
    %v202 = vld [vmem:[#allocation7 + $0x68] sm:$0xff]
    %v203 = vld [vmem:[#allocation7 + $0x70] sm:$0xff]
    %v204 = vld [vmem:[#allocation7 + $0x78] sm:$0xff]
    %v205 = vld [vmem:[#allocation7 + $0x80] sm:$0xff]
    %v206 = vld [vmem:[#allocation7 + $0x88] sm:$0xff]
    %v207 = vld [vmem:[#allocation7 + $0x90] sm:$0xff]
    %v208 = vld [vmem:[#allocation7 + $0x98] sm:$0xff]
    %v209 = vld [vmem:[#allocation7 + $0xa0] sm:$0xff]
    %v210 = vld [vmem:[#allocation7 + $0xa8] sm:$0xff]
    %v211 = vld [vmem:[#allocation7 + $0xb0] sm:$0xff]
    %v212 = vld [vmem:[#allocation7 + $0xb8] sm:$0xff]
    %v213 = vld [vmem:[#allocation7 + $0xc0] sm:$0xff]
    %v214 = vld [vmem:[#allocation7 + $0xc8] sm:$0xff]
    %v215 = vld [vmem:[#allocation7 + $0xd0] sm:$0xff]
    %v216 = vld [vmem:[#allocation7 + $0xd8] sm:$0xff]
    %v217 = vld [vmem:[#allocation7 + $0xe0] sm:$0xff]
    %v218 = vld [vmem:[#allocation7 + $0xe8] sm:$0xff]
    %v219 = vld [vmem:[#allocation7 + $0xf0] sm:$0xff]
    %v220 = vld [vmem:[#allocation7 + $0xf8] sm:$0xff]
    %v221 = vld [vmem:[#allocation7 + $0x100] sm:$0xff]
    %v222 = vld [vmem:[#allocation7 + $0x108] sm:$0xff]
    %v223 = vld [vmem:[#allocation7 + $0x110] sm:$0xff]
    %v224 = vld [vmem:[#allocation7 + $0x118] sm:$0xff]
    %v225 = vld [vmem:[#allocation7 + $0x120] sm:$0xff]
    %v226 = vld [vmem:[#allocation7 + $0x128] sm:$0xff]
    %v227 = vld [vmem:[#allocation7 + $0x130] sm:$0xff]
    %v228 = vld [vmem:[#allocation7 + $0x138] sm:$0xff]
    %v229 = vld [vmem:[#allocation7 + $0x140] sm:$0xff]
    %v230 = vld [vmem:[#allocation7 + $0x148] sm:$0xff]
    %v231 = vld [vmem:[#allocation7 + $0x150] sm:$0xff]
    %v232 = vld [vmem:[#allocation7 + $0x158] sm:$0xff]
    %v233 = vld [vmem:[#allocation7 + $0x160] sm:$0xff]
    %v234 = vld [vmem:[#allocation7 + $0x168] sm:$0xff]
    %v235 = vld [vmem:[#allocation7 + $0x170] sm:$0xff]
    %v236 = vld [vmem:[#allocation7 + $0x178] sm:$0xff]
    %v237 = vld [vmem:[#allocation7 + $0x180] sm:$0xff]
    %v238 = vld [vmem:[#allocation7 + $0x188] sm:$0xff]
    %v239 = vld [vmem:[#allocation7 + $0x190] sm:$0xff]
    %v240 = vld [vmem:[#allocation7 + $0x198] sm:$0xff]
    %v241 = vld [vmem:[#allocation7 + $0x1a0] sm:$0xff]
    %v242 = vld [vmem:[#allocation7 + $0x1a8] sm:$0xff]
    %v243 = vld [vmem:[#allocation7 + $0x1b0] sm:$0xff]
    %v244 = vld [vmem:[#allocation7 + $0x1b8] sm:$0xff]
    %v245 = vld [vmem:[#allocation7 + $0x1c0] sm:$0xff]
    %v246 = vld [vmem:[#allocation7 + $0x1c8] sm:$0xff]
    %v247 = vld [vmem:[#allocation7 + $0x1d0] sm:$0xff]
    %v248 = vld [vmem:[#allocation7 + $0x1d8] sm:$0xff]
    %v249 = vld [vmem:[#allocation7 + $0x1e0] sm:$0xff]
    %v250 = vld [vmem:[#allocation7 + $0x1e8] sm:$0xff]
    %v251 = vld [vmem:[#allocation7 + $0x1f0] sm:$0xff]
    %v252 = vld [vmem:[#allocation7 + $0x1f8] sm:$0xff]
    %v253 = vld [vmem:[#allocation7 + $0x200] sm:$0xff]
    %v254 = vld [vmem:[#allocation7 + $0x208] sm:$0xff]
    %v255 = vld [vmem:[#allocation7 + $0x210] sm:$0xff]
    %v256 = vld [vmem:[#allocation7 + $0x218] sm:$0xff]
    %v257 = vld [vmem:[#allocation7 + $0x220] sm:$0xff]
    %v258 = vld [vmem:[#allocation7 + $0x228] sm:$0xff]
    %v259 = vld [vmem:[#allocation7 + $0x230] sm:$0xff]
    %v260 = vld [vmem:[#allocation7 + $0x238] sm:$0xff]
    %v261 = vld [vmem:[#allocation7 + $0x240] sm:$0xff]
    %v262 = vld [vmem:[#allocation7 + $0x248] sm:$0xff]
    %v263 = vld [vmem:[#allocation7 + $0x250] sm:$0xff]
    %v264 = vld [vmem:[#allocation7 + $0x258] sm:$0xff]
    %v265 = vld [vmem:[#allocation7 + $0x260] sm:$0xff]
    %v266 = vld [vmem:[#allocation7 + $0x268] sm:$0xff]
    %v267 = vld [vmem:[#allocation7 + $0x270] sm:$0xff]
    %v268 = vld [vmem:[#allocation7 + $0x278] sm:$0xff]
    %v269 = vld [vmem:[#allocation7 + $0x280] sm:$0xff]
    %v270 = vld [vmem:[#allocation7 + $0x288] sm:$0xff]
    %v271 = vld [vmem:[#allocation7 + $0x290] sm:$0xff]
    %v272 = vld [vmem:[#allocation7 + $0x298] sm:$0xff]
    %v273 = vld [vmem:[#allocation7 + $0x2a0] sm:$0xff]
    %v274 = vld [vmem:[#allocation7 + $0x2a8] sm:$0xff]
    %v275 = vld [vmem:[#allocation7 + $0x2b0] sm:$0xff]
    %v276 = vld [vmem:[#allocation7 + $0x2b8] sm:$0xff]
    %v277 = vld [vmem:[#allocation7 + $0x2c0] sm:$0xff]
    %v278 = vld [vmem:[#allocation7 + $0x2c8] sm:$0xff]
    %v279 = vld [vmem:[#allocation7 + $0x2d0] sm:$0xff]
    %v280 = vld [vmem:[#allocation7 + $0x2d8] sm:$0xff]
    %v281 = vld [vmem:[#allocation7 + $0x2e0] sm:$0xff]
    %v282 = vld [vmem:[#allocation7 + $0x2e8] sm:$0xff]
    %v283 = vld [vmem:[#allocation7 + $0x2f0] sm:$0xff]
    %v284 = vld [vmem:[#allocation7 + $0x2f8] sm:$0xff]
    %v285 = vld [vmem:[#allocation7 + $0x300] sm:$0xff]
    %v286 = vld [vmem:[#allocation7 + $0x308] sm:$0xff]
    %v287 = vld [vmem:[#allocation7 + $0x310] sm:$0xff]
    %v288 = vld [vmem:[#allocation7 + $0x318] sm:$0xff]
    %v289 = vld [vmem:[#allocation7 + $0x320] sm:$0xff]
    %v290 = vld [vmem:[#allocation7 + $0x328] sm:$0xff]
    %v291 = vld [vmem:[#allocation7 + $0x330] sm:$0xff]
    %v292 = vld [vmem:[#allocation7 + $0x338] sm:$0xff]
    %v293 = vld [vmem:[#allocation7 + $0x340] sm:$0xff]
    %v294 = vld [vmem:[#allocation7 + $0x348] sm:$0xff]
    %v295 = vld [vmem:[#allocation7 + $0x350] sm:$0xff]
    %v296 = vld [vmem:[#allocation7 + $0x358] sm:$0xff]
    %v297 = vld [vmem:[#allocation7 + $0x360] sm:$0xff]
    %v298 = vld [vmem:[#allocation7 + $0x368] sm:$0xff]
    %v299 = vld [vmem:[#allocation7 + $0x370] sm:$0xff]
    %v300 = vld [vmem:[#allocation7 + $0x378] sm:$0xff]
    %v301 = vld [vmem:[#allocation7 + $0x380] sm:$0xff]
    %v302 = vld [vmem:[#allocation7 + $0x388] sm:$0xff]
    %v303 = vld [vmem:[#allocation7 + $0x390] sm:$0xff]
    %v304 = vld [vmem:[#allocation7 + $0x398] sm:$0xff]
    %v305 = vld [vmem:[#allocation7 + $0x3a0] sm:$0xff]
    %v306 = vld [vmem:[#allocation7 + $0x3a8] sm:$0xff]
    %v307 = vld [vmem:[#allocation7 + $0x3b0] sm:$0xff]
    %v308 = vld [vmem:[#allocation7 + $0x3b8] sm:$0xff]
    %v309 = vld [vmem:[#allocation7 + $0x3c0] sm:$0xff]
    %v310 = vld [vmem:[#allocation7 + $0x3c8] sm:$0xff]
    %v311 = vld [vmem:[#allocation7 + $0x3d0] sm:$0xff]
    %v312 = vld [vmem:[#allocation7 + $0x3d8] sm:$0xff]
    %v313 = vld [vmem:[#allocation7 + $0x3e0] sm:$0xff]
    %v314 = vld [vmem:[#allocation7 + $0x3e8] sm:$0xff]
    %v315 = vld [vmem:[#allocation7 + $0x3f0] sm:$0xff]
    %v316 = vld [vmem:[#allocation7 + $0x3f8] sm:$0xff]
    %v317 = vld [vmem:[#allocation7 + $0x400] sm:$0xff]
    %v318 = vld [vmem:[#allocation7 + $0x408] sm:$0xff]
    %v319 = vld [vmem:[#allocation7 + $0x410] sm:$0xff]
    %v320 = vld [vmem:[#allocation7 + $0x418] sm:$0xff]
    %v321 = vld [vmem:[#allocation7 + $0x420] sm:$0xff]
    %v322 = vld [vmem:[#allocation7 + $0x428] sm:$0xff]
    %v323 = vld [vmem:[#allocation7 + $0x430] sm:$0xff]
    %v324 = vld [vmem:[#allocation7 + $0x438] sm:$0xff]
    %v325 = vld [vmem:[#allocation7 + $0x440] sm:$0xff]
    %v326 = vld [vmem:[#allocation7 + $0x448] sm:$0xff]
    %v327 = vld [vmem:[#allocation7 + $0x450] sm:$0xff]
    %v328 = vld [vmem:[#allocation7 + $0x458] sm:$0xff]
    %v329 = vld [vmem:[#allocation7 + $0x460] sm:$0xff]
    %v330 = vld [vmem:[#allocation7 + $0x468] sm:$0xff]
    %v331 = vld [vmem:[#allocation7 + $0x470] sm:$0xff]
    %v332 = vld [vmem:[#allocation7 + $0x478] sm:$0xff]
    %v333 = vld [vmem:[#allocation7 + $0x480] sm:$0xff]
    %v334 = vld [vmem:[#allocation7 + $0x488] sm:$0xff]
    %v335 = vld [vmem:[#allocation7 + $0x490] sm:$0xff]
    %v336 = vld [vmem:[#allocation7 + $0x498] sm:$0xff]
    %v337 = vld [vmem:[#allocation7 + $0x4a0] sm:$0xff]
    %v338 = vld [vmem:[#allocation7 + $0x4a8] sm:$0xff]
    %v339 = vld [vmem:[#allocation7 + $0x4b0] sm:$0xff]
    %v340 = vld [vmem:[#allocation7 + $0x4b8] sm:$0xff]
    %v341 = vld [vmem:[#allocation7 + $0x4c0] sm:$0xff]
    %v342 = vld [vmem:[#allocation7 + $0x4c8] sm:$0xff]
    %v343 = vld [vmem:[#allocation7 + $0x4d0] sm:$0xff]
    %v344 = vld [vmem:[#allocation7 + $0x4d8] sm:$0xff]
    %v345 = vld [vmem:[#allocation7 + $0x4e0] sm:$0xff]
    %v346 = vld [vmem:[#allocation7 + $0x4e8] sm:$0xff]
    %v347 = vld [vmem:[#allocation7 + $0x4f0] sm:$0xff]
    %v348 = vld [vmem:[#allocation7 + $0x4f8] sm:$0xff]
    %v349 = vld [vmem:[#allocation7 + $0x500] sm:$0xff]
    %v350 = vld [vmem:[#allocation7 + $0x508] sm:$0xff]
    %v351 = vld [vmem:[#allocation7 + $0x510] sm:$0xff]
    %v352 = vld [vmem:[#allocation7 + $0x518] sm:$0xff]
    %v353 = vld [vmem:[#allocation7 + $0x520] sm:$0xff]
    %v354 = vld [vmem:[#allocation7 + $0x528] sm:$0xff]
    %v355 = vld [vmem:[#allocation7 + $0x530] sm:$0xff]
    %v356 = vld [vmem:[#allocation7 + $0x538] sm:$0xff]
    %v357 = vld [vmem:[#allocation7 + $0x540] sm:$0xff]
    %v358 = vld [vmem:[#allocation7 + $0x548] sm:$0xff]
    %v359 = vld [vmem:[#allocation7 + $0x550] sm:$0xff]
    %v360 = vld [vmem:[#allocation7 + $0x558] sm:$0xff]
    %v361 = vld [vmem:[#allocation7 + $0x560] sm:$0xff]
    %v362 = vld [vmem:[#allocation7 + $0x568] sm:$0xff]
    %v363 = vld [vmem:[#allocation7 + $0x570] sm:$0xff]
    %v364 = vld [vmem:[#allocation7 + $0x578] sm:$0xff]
    %v365 = vld [vmem:[#allocation7 + $0x580] sm:$0xff]
    %v366 = vld [vmem:[#allocation7 + $0x588] sm:$0xff]
    %v367 = vld [vmem:[#allocation7 + $0x590] sm:$0xff]
    %v368 = vld [vmem:[#allocation7 + $0x598] sm:$0xff]
    %v369 = vld [vmem:[#allocation7 + $0x5a0] sm:$0xff]
    %v370 = vld [vmem:[#allocation7 + $0x5a8] sm:$0xff]
    %v371 = vld [vmem:[#allocation7 + $0x5b0] sm:$0xff]
    %v372 = vld [vmem:[#allocation7 + $0x5b8] sm:$0xff]
    %v373 = vld [vmem:[#allocation7 + $0x5c0] sm:$0xff]
    %v374 = vld [vmem:[#allocation7 + $0x5c8] sm:$0xff]
    %v375 = vld [vmem:[#allocation7 + $0x5d0] sm:$0xff]
    %v376 = vld [vmem:[#allocation7 + $0x5d8] sm:$0xff]
    %v377 = vld [vmem:[#allocation7 + $0x5e0] sm:$0xff]
    %v378 = vld [vmem:[#allocation7 + $0x5e8] sm:$0xff]
    %v379 = vld [vmem:[#allocation7 + $0x5f0] sm:$0xff]
    %v380 = vld [vmem:[#allocation7 + $0x5f8] sm:$0xff]
    %v381 = vld [vmem:[#allocation7 + $0x600] sm:$0xff]
    %v382 = vld [vmem:[#allocation7 + $0x608] sm:$0xff]
    %v383 = vld [vmem:[#allocation7 + $0x610] sm:$0xff]
    %v384 = vld [vmem:[#allocation7 + $0x618] sm:$0xff]
    %v385 = vld [vmem:[#allocation7 + $0x620] sm:$0xff]
    %v386 = vld [vmem:[#allocation7 + $0x628] sm:$0xff]
    %v387 = vld [vmem:[#allocation7 + $0x630] sm:$0xff]
    %v388 = vld [vmem:[#allocation7 + $0x638] sm:$0xff]
    %v389 = vld [vmem:[#allocation7 + $0x640] sm:$0xff]
    %v390 = vld [vmem:[#allocation7 + $0x648] sm:$0xff]
    %v391 = vld [vmem:[#allocation7 + $0x650] sm:$0xff]
    %v392 = vld [vmem:[#allocation7 + $0x658] sm:$0xff]
    %v393 = vld [vmem:[#allocation7 + $0x660] sm:$0xff]
    %v394 = vld [vmem:[#allocation7 + $0x668] sm:$0xff]
    %v395 = vld [vmem:[#allocation7 + $0x670] sm:$0xff]
    %v396 = vld [vmem:[#allocation7 + $0x678] sm:$0xff]
    %v397 = vld [vmem:[#allocation7 + $0x680] sm:$0xff]
    %v398 = vld [vmem:[#allocation7 + $0x688] sm:$0xff]
    %v399 = vld [vmem:[#allocation7 + $0x690] sm:$0xff]
    %v400 = vld [vmem:[#allocation7 + $0x698] sm:$0xff]
    %v401 = vld [vmem:[#allocation7 + $0x6a0] sm:$0xff]
    %v402 = vld [vmem:[#allocation7 + $0x6a8] sm:$0xff]
    %v403 = vld [vmem:[#allocation7 + $0x6b0] sm:$0xff]
    %v404 = vld [vmem:[#allocation7 + $0x6b8] sm:$0xff]
    %v405 = vld [vmem:[#allocation7 + $0x6c0] sm:$0xff]
    %v406 = vld [vmem:[#allocation7 + $0x6c8] sm:$0xff]
    %v407 = vld [vmem:[#allocation7 + $0x6d0] sm:$0xff]
    %v408 = vld [vmem:[#allocation7 + $0x6d8] sm:$0xff]
    %v409 = vld [vmem:[#allocation7 + $0x6e0] sm:$0xff]
    %v410 = vld [vmem:[#allocation7 + $0x6e8] sm:$0xff]
    %v411 = vld [vmem:[#allocation7 + $0x6f0] sm:$0xff]
    %v412 = vld [vmem:[#allocation7 + $0x6f8] sm:$0xff]
    %v413 = vld [vmem:[#allocation7 + $0x700] sm:$0xff]
    %v414 = vld [vmem:[#allocation7 + $0x708] sm:$0xff]
    %v415 = vld [vmem:[#allocation7 + $0x710] sm:$0xff]
    %v416 = vld [vmem:[#allocation7 + $0x718] sm:$0xff]
    %v417 = vld [vmem:[#allocation7 + $0x720] sm:$0xff]
    %v418 = vld [vmem:[#allocation7 + $0x728] sm:$0xff]
    %v419 = vld [vmem:[#allocation7 + $0x730] sm:$0xff]
    %v420 = vld [vmem:[#allocation7 + $0x738] sm:$0xff]
    %v421 = vld [vmem:[#allocation7 + $0x740] sm:$0xff]
    %v422 = vld [vmem:[#allocation7 + $0x748] sm:$0xff]
    %v423 = vld [vmem:[#allocation7 + $0x750] sm:$0xff]
    %v424 = vld [vmem:[#allocation7 + $0x758] sm:$0xff]
    %v425 = vld [vmem:[#allocation7 + $0x760] sm:$0xff]
    %v426 = vld [vmem:[#allocation7 + $0x768] sm:$0xff]
    %v427 = vld [vmem:[#allocation7 + $0x770] sm:$0xff]
    %v428 = vld [vmem:[#allocation7 + $0x778] sm:$0xff]
    %v429 = vld [vmem:[#allocation7 + $0x780] sm:$0xff]
    %v430 = vld [vmem:[#allocation7 + $0x788] sm:$0xff]
    %v431 = vld [vmem:[#allocation7 + $0x790] sm:$0xff]
    %v432 = vld [vmem:[#allocation7 + $0x798] sm:$0xff]
    %v433 = vld [vmem:[#allocation7 + $0x7a0] sm:$0xff]
    %v434 = vld [vmem:[#allocation7 + $0x7a8] sm:$0xff]
    %v435 = vld [vmem:[#allocation7 + $0x7b0] sm:$0xff]
    %v436 = vld [vmem:[#allocation7 + $0x7b8] sm:$0xff]
    %v437 = vld [vmem:[#allocation7 + $0x7c0] sm:$0xff]
    %v438 = vld [vmem:[#allocation7 + $0x7c8] sm:$0xff]
    %v439 = vld [vmem:[#allocation7 + $0x7d0] sm:$0xff]
    %v440 = vld [vmem:[#allocation7 + $0x7d8] sm:$0xff]
    %v441 = vld [vmem:[#allocation7 + $0x7e0] sm:$0xff]
    %v442 = vld [vmem:[#allocation7 + $0x7e8] sm:$0xff]
    %v443 = vld [vmem:[#allocation7 + $0x7f0] sm:$0xff]
    %v444 = vld [vmem:[#allocation7 + $0x7f8] sm:$0xff]
    %v445 = vld [vmem:[#allocation7 + $0x800] sm:$0xff]
    %v446 = vld [vmem:[#allocation7 + $0x808] sm:$0xff]
    %v447 = vld [vmem:[#allocation7 + $0x810] sm:$0xff]
    %v448 = vld [vmem:[#allocation7 + $0x818] sm:$0xff]
    %v449 = vld [vmem:[#allocation7 + $0x820] sm:$0xff]
    %v450 = vld [vmem:[#allocation7 + $0x828] sm:$0xff]
    %v451 = vld [vmem:[#allocation7 + $0x830] sm:$0xff]
    %v452 = vld [vmem:[#allocation7 + $0x838] sm:$0xff]
    %v453 = vld [vmem:[#allocation7 + $0x840] sm:$0xff]
    %v454 = vld [vmem:[#allocation7 + $0x848] sm:$0xff]
    %v455 = vld [vmem:[#allocation7 + $0x850] sm:$0xff]
    %v456 = vld [vmem:[#allocation7 + $0x858] sm:$0xff]
    %v457 = vld [vmem:[#allocation7 + $0x860] sm:$0xff]
    %v458 = vld [vmem:[#allocation7 + $0x868] sm:$0xff]
    %v459 = vld [vmem:[#allocation7 + $0x870] sm:$0xff]
    %v460 = vld [vmem:[#allocation7 + $0x878] sm:$0xff]
    %v461 = vld [vmem:[#allocation7 + $0x880] sm:$0xff]
    %v462 = vld [vmem:[#allocation7 + $0x888] sm:$0xff]
    %v463 = vld [vmem:[#allocation7 + $0x890] sm:$0xff]
    %v464 = vld [vmem:[#allocation7 + $0x898] sm:$0xff]
    %v465 = vld [vmem:[#allocation7 + $0x8a0] sm:$0xff]
    %v466 = vld [vmem:[#allocation7 + $0x8a8] sm:$0xff]
    %v467 = vld [vmem:[#allocation7 + $0x8b0] sm:$0xff]
    %v468 = vld [vmem:[#allocation7 + $0x8b8] sm:$0xff]
    %v469 = vld [vmem:[#allocation7 + $0x8c0] sm:$0xff]
    %v470 = vld [vmem:[#allocation7 + $0x8c8] sm:$0xff]
    %v471 = vld [vmem:[#allocation7 + $0x8d0] sm:$0xff]
    %v472 = vld [vmem:[#allocation7 + $0x8d8] sm:$0xff]
    %v473 = vld [vmem:[#allocation7 + $0x8e0] sm:$0xff]
    %v474 = vld [vmem:[#allocation7 + $0x8e8] sm:$0xff]
    %v475 = vld [vmem:[#allocation7 + $0x8f0] sm:$0xff]
    %v476 = vld [vmem:[#allocation7 + $0x8f8] sm:$0xff]
    %v477 = vld [vmem:[#allocation7 + $0x900] sm:$0xff]
    %v478 = vld [vmem:[#allocation7 + $0x908] sm:$0xff]
    %v479 = vld [vmem:[#allocation7 + $0x910] sm:$0xff]
    %v480 = vld [vmem:[#allocation7 + $0x918] sm:$0xff]
    %v481 = vld [vmem:[#allocation7 + $0x920] sm:$0xff]
    %v482 = vld [vmem:[#allocation7 + $0x928] sm:$0xff]
    %v483 = vld [vmem:[#allocation7 + $0x930] sm:$0xff]
    %v484 = vld [vmem:[#allocation7 + $0x938] sm:$0xff]
    %v485 = vld [vmem:[#allocation7 + $0x940] sm:$0xff]
    %v486 = vld [vmem:[#allocation7 + $0x948] sm:$0xff]
    %v487 = vld [vmem:[#allocation7 + $0x950] sm:$0xff]
    %v488 = vld [vmem:[#allocation7 + $0x958] sm:$0xff]
    %v489 = vld [vmem:[#allocation7 + $0x960] sm:$0xff]
    %v490 = vld [vmem:[#allocation7 + $0x968] sm:$0xff]
    %v491 = vld [vmem:[#allocation7 + $0x970] sm:$0xff]
    %v492 = vld [vmem:[#allocation7 + $0x978] sm:$0xff]
    %v493 = vld [vmem:[#allocation7 + $0x980] sm:$0xff]
    %v494 = vld [vmem:[#allocation7 + $0x988] sm:$0xff]
    %v495 = vld [vmem:[#allocation7 + $0x990] sm:$0xff]
    %v496 = vld [vmem:[#allocation7 + $0x998] sm:$0xff]
    %v497 = vld [vmem:[#allocation7 + $0x9a0] sm:$0xff]
    %v498 = vld [vmem:[#allocation7 + $0x9a8] sm:$0xff]
    %v499 = vld [vmem:[#allocation7 + $0x9b0] sm:$0xff]
    %v500 = vld [vmem:[#allocation7 + $0x9b8] sm:$0xff]
    %v501 = vld [vmem:[#allocation7 + $0x9c0] sm:$0xff]
    %v502 = vld [vmem:[#allocation7 + $0x9c8] sm:$0xff]
    %v503 = vld [vmem:[#allocation7 + $0x9d0] sm:$0xff]
    %v504 = vld [vmem:[#allocation7 + $0x9d8] sm:$0xff]
    %v505 = vld [vmem:[#allocation7 + $0x9e0] sm:$0xff]
    %v506 = vld [vmem:[#allocation7 + $0x9e8] sm:$0xff]
    %v507 = vld [vmem:[#allocation7 + $0x9f0] sm:$0xff]
    %v508 = vld [vmem:[#allocation7 + $0x9f8] sm:$0xff]
    %v509 = vld [vmem:[#allocation7 + $0xa00] sm:$0xff]
    %v510 = vld [vmem:[#allocation7 + $0xa08] sm:$0xff]
    %v511 = vld [vmem:[#allocation7 + $0xa10] sm:$0xff]
    %v512 = vld [vmem:[#allocation7 + $0xa18] sm:$0xff]
    %v513 = vld [vmem:[#allocation7 + $0xa20] sm:$0xff]
    %v514 = vld [vmem:[#allocation7 + $0xa28] sm:$0xff]
    %v515 = vld [vmem:[#allocation7 + $0xa30] sm:$0xff]
    %v516 = vld [vmem:[#allocation7 + $0xa38] sm:$0xff]
    %v517 = vld [vmem:[#allocation7 + $0xa40] sm:$0xff]
    %v518 = vld [vmem:[#allocation7 + $0xa48] sm:$0xff]
    %v519 = vld [vmem:[#allocation7 + $0xa50] sm:$0xff]
    %v520 = vld [vmem:[#allocation7 + $0xa58] sm:$0xff]
    %v521 = vld [vmem:[#allocation7 + $0xa60] sm:$0xff]
    %v522 = vld [vmem:[#allocation7 + $0xa68] sm:$0xff]
    %v523 = vld [vmem:[#allocation7 + $0xa70] sm:$0xff]
    %v524 = vld [vmem:[#allocation7 + $0xa78] sm:$0xff]
    %v525 = vld [vmem:[#allocation7 + $0xa80] sm:$0xff]
    %v526 = vld [vmem:[#allocation7 + $0xa88] sm:$0xff]
    %v527 = vld [vmem:[#allocation7 + $0xa90] sm:$0xff]
    %v528 = vld [vmem:[#allocation7 + $0xa98] sm:$0xff]
    %v529 = vld [vmem:[#allocation7 + $0xaa0] sm:$0xff]
    %v530 = vld [vmem:[#allocation7 + $0xaa8] sm:$0xff]
    %v531 = vld [vmem:[#allocation7 + $0xab0] sm:$0xff]
    %v532 = vld [vmem:[#allocation7 + $0xab8] sm:$0xff]
    %v533 = vld [vmem:[#allocation7 + $0xac0] sm:$0xff]
    %v534 = vld [vmem:[#allocation7 + $0xac8] sm:$0xff]
    %v535 = vld [vmem:[#allocation7 + $0xad0] sm:$0xff]
    %v536 = vld [vmem:[#allocation7 + $0xad8] sm:$0xff]
    %v537 = vld [vmem:[#allocation7 + $0xae0] sm:$0xff]
    %v538 = vld [vmem:[#allocation7 + $0xae8] sm:$0xff]
    %v539 = vld [vmem:[#allocation7 + $0xaf0] sm:$0xff]
    %v540 = vld [vmem:[#allocation7 + $0xaf8] sm:$0xff]
    %v541 = vld [vmem:[#allocation7 + $0xb00] sm:$0xff]
    %v542 = vld [vmem:[#allocation7 + $0xb08] sm:$0xff]
    %v543 = vld [vmem:[#allocation7 + $0xb10] sm:$0xff]
    %v544 = vld [vmem:[#allocation7 + $0xb18] sm:$0xff]
    %v545 = vld [vmem:[#allocation7 + $0xb20] sm:$0xff]
    %v546 = vld [vmem:[#allocation7 + $0xb28] sm:$0xff]
    %v547 = vld [vmem:[#allocation7 + $0xb30] sm:$0xff]
    %v548 = vld [vmem:[#allocation7 + $0xb38] sm:$0xff]
    %v549 = vld [vmem:[#allocation7 + $0xb40] sm:$0xff]
    %v550 = vld [vmem:[#allocation7 + $0xb48] sm:$0xff]
    %v551 = vld [vmem:[#allocation7 + $0xb50] sm:$0xff]
    %v552 = vld [vmem:[#allocation7 + $0xb58] sm:$0xff]
    %v553 = vld [vmem:[#allocation7 + $0xb60] sm:$0xff]
    %v554 = vld [vmem:[#allocation7 + $0xb68] sm:$0xff]
    %v555 = vld [vmem:[#allocation7 + $0xb70] sm:$0xff]
    %v556 = vld [vmem:[#allocation7 + $0xb78] sm:$0xff]
    %v557 = vld [vmem:[#allocation7 + $0xb80] sm:$0xff]
    %v558 = vld [vmem:[#allocation7 + $0xb88] sm:$0xff]
    %v559 = vld [vmem:[#allocation7 + $0xb90] sm:$0xff]
    %v560 = vld [vmem:[#allocation7 + $0xb98] sm:$0xff]
    %v561 = vld [vmem:[#allocation7 + $0xba0] sm:$0xff]
    %v562 = vld [vmem:[#allocation7 + $0xba8] sm:$0xff]
    %v563 = vld [vmem:[#allocation7 + $0xbb0] sm:$0xff]
    %v564 = vld [vmem:[#allocation7 + $0xbb8] sm:$0xff]
    %v565 = vld [vmem:[#allocation7 + $0xbc0] sm:$0xff]
    %v566 = vld [vmem:[#allocation7 + $0xbc8] sm:$0xff]
    %v567 = vld [vmem:[#allocation7 + $0xbd0] sm:$0xff]
    %v568 = vld [vmem:[#allocation7 + $0xbd8] sm:$0xff]
    %v569 = vld [vmem:[#allocation7 + $0xbe0] sm:$0xff]
    %v570 = vld [vmem:[#allocation7 + $0xbe8] sm:$0xff]
    %v571 = vld [vmem:[#allocation7 + $0xbf0] sm:$0xff]
    %v572 = vld [vmem:[#allocation7 + $0xbf8] sm:$0xff]
    %v573 = vld [vmem:[#allocation9] sm:$0x3]
    %v575 = vlaneseq
    %v576 = vshrl.u32 %v575, 7
    %v577 = vsub.s32 0, %v576
    %v578 = vrot.slane %v573, %v577
    %v579 = vlaneseq
    %v580 = vshrl.u32 %v579, 7
    %v581 = vsub.s32 1, %v580
    %v582 = vrot.slane %v573, %v581
    %v969 = vunpack.c.l.b16 %v189
    %v970 = vunpack.c.h.b16 %v189
    %v971 = vunpack.c.l.b16 %v190
    %v972 = vunpack.c.h.b16 %v190
    %v973 = vunpack.c.l.b16 %v191
    %v974 = vunpack.c.h.b16 %v191
    %v975 = vunpack.c.l.b16 %v192
    %v976 = vunpack.c.h.b16 %v192
    %v977 = vunpack.c.l.b16 %v193
    %v978 = vunpack.c.h.b16 %v193
    %v979 = vunpack.c.l.b16 %v194
    %v980 = vunpack.c.h.b16 %v194
    %v981 = vunpack.c.l.b16 %v195
    %v982 = vunpack.c.h.b16 %v195
    %v983 = vunpack.c.l.b16 %v196
    %v984 = vunpack.c.h.b16 %v196
    %v985 = vunpack.c.l.b16 %v197
    %v986 = vunpack.c.h.b16 %v197
    %v987 = vunpack.c.l.b16 %v198
    %v988 = vunpack.c.h.b16 %v198
    %v989 = vunpack.c.l.b16 %v199
    %v990 = vunpack.c.h.b16 %v199
    %v991 = vunpack.c.l.b16 %v200
    %v992 = vunpack.c.h.b16 %v200
    %v993 = vunpack.c.l.b16 %v201
    %v994 = vunpack.c.h.b16 %v201
    %v995 = vunpack.c.l.b16 %v202
    %v996 = vunpack.c.h.b16 %v202
    %v997 = vunpack.c.l.b16 %v203
    %v998 = vunpack.c.h.b16 %v203
    %v999 = vunpack.c.l.b16 %v204
    %v1000 = vunpack.c.h.b16 %v204
    %v1001 = vunpack.c.l.b16 %v205
    %v1002 = vunpack.c.h.b16 %v205
    %v1003 = vunpack.c.l.b16 %v206
    %v1004 = vunpack.c.h.b16 %v206
    %v1005 = vunpack.c.l.b16 %v207
    %v1006 = vunpack.c.h.b16 %v207
    %v1007 = vunpack.c.l.b16 %v208
    %v1008 = vunpack.c.h.b16 %v208
    %v1009 = vunpack.c.l.b16 %v209
    %v1010 = vunpack.c.h.b16 %v209
    %v1011 = vunpack.c.l.b16 %v210
    %v1012 = vunpack.c.h.b16 %v210
    %v1013 = vunpack.c.l.b16 %v211
    %v1014 = vunpack.c.h.b16 %v211
    %v1015 = vunpack.c.l.b16 %v212
    %v1016 = vunpack.c.h.b16 %v212
    %v1017 = vunpack.c.l.b16 %v213
    %v1018 = vunpack.c.h.b16 %v213
    %v1019 = vunpack.c.l.b16 %v214
    %v1020 = vunpack.c.h.b16 %v214
    %v1021 = vunpack.c.l.b16 %v215
    %v1022 = vunpack.c.h.b16 %v215
    %v1023 = vunpack.c.l.b16 %v216
    %v1024 = vunpack.c.h.b16 %v216
    %v1025 = vunpack.c.l.b16 %v217
    %v1026 = vunpack.c.h.b16 %v217
    %v1027 = vunpack.c.l.b16 %v218
    %v1028 = vunpack.c.h.b16 %v218
    %v1029 = vunpack.c.l.b16 %v219
    %v1030 = vunpack.c.h.b16 %v219
    %v1031 = vunpack.c.l.b16 %v220
    %v1032 = vunpack.c.h.b16 %v220
    %v1033 = vunpack.c.l.b16 %v221
    %v1034 = vunpack.c.h.b16 %v221
    %v1035 = vunpack.c.l.b16 %v222
    %v1036 = vunpack.c.h.b16 %v222
    %v1037 = vunpack.c.l.b16 %v223
    %v1038 = vunpack.c.h.b16 %v223
    %v1039 = vunpack.c.l.b16 %v224
    %v1040 = vunpack.c.h.b16 %v224
    %v1041 = vunpack.c.l.b16 %v225
    %v1042 = vunpack.c.h.b16 %v225
    %v1043 = vunpack.c.l.b16 %v226
    %v1044 = vunpack.c.h.b16 %v226
    %v1045 = vunpack.c.l.b16 %v227
    %v1046 = vunpack.c.h.b16 %v227
    %v1047 = vunpack.c.l.b16 %v228
    %v1048 = vunpack.c.h.b16 %v228
    %v1049 = vunpack.c.l.b16 %v229
    %v1050 = vunpack.c.h.b16 %v229
    %v1051 = vunpack.c.l.b16 %v230
    %v1052 = vunpack.c.h.b16 %v230
    %v1053 = vunpack.c.l.b16 %v231
    %v1054 = vunpack.c.h.b16 %v231
    %v1055 = vunpack.c.l.b16 %v232
    %v1056 = vunpack.c.h.b16 %v232
    %v1057 = vunpack.c.l.b16 %v233
    %v1058 = vunpack.c.h.b16 %v233
    %v1059 = vunpack.c.l.b16 %v234
    %v1060 = vunpack.c.h.b16 %v234
    %v1061 = vunpack.c.l.b16 %v235
    %v1062 = vunpack.c.h.b16 %v235
    %v1063 = vunpack.c.l.b16 %v236
    %v1064 = vunpack.c.h.b16 %v236
    %v1065 = vunpack.c.l.b16 %v237
    %v1066 = vunpack.c.h.b16 %v237
    %v1067 = vunpack.c.l.b16 %v238
    %v1068 = vunpack.c.h.b16 %v238
    %v1069 = vunpack.c.l.b16 %v239
    %v1070 = vunpack.c.h.b16 %v239
    %v1071 = vunpack.c.l.b16 %v240
    %v1072 = vunpack.c.h.b16 %v240
    %v1073 = vunpack.c.l.b16 %v241
    %v1074 = vunpack.c.h.b16 %v241
    %v1075 = vunpack.c.l.b16 %v242
    %v1076 = vunpack.c.h.b16 %v242
    %v1077 = vunpack.c.l.b16 %v243
    %v1078 = vunpack.c.h.b16 %v243
    %v1079 = vunpack.c.l.b16 %v244
    %v1080 = vunpack.c.h.b16 %v244
    %v1081 = vunpack.c.l.b16 %v245
    %v1082 = vunpack.c.h.b16 %v245
    %v1083 = vunpack.c.l.b16 %v246
    %v1084 = vunpack.c.h.b16 %v246
    %v1085 = vunpack.c.l.b16 %v247
    %v1086 = vunpack.c.h.b16 %v247
    %v1087 = vunpack.c.l.b16 %v248
    %v1088 = vunpack.c.h.b16 %v248
    %v1089 = vunpack.c.l.b16 %v249
    %v1090 = vunpack.c.h.b16 %v249
    %v1091 = vunpack.c.l.b16 %v250
    %v1092 = vunpack.c.h.b16 %v250
    %v1093 = vunpack.c.l.b16 %v251
    %v1094 = vunpack.c.h.b16 %v251
    %v1095 = vunpack.c.l.b16 %v252
    %v1096 = vunpack.c.h.b16 %v252
    %v1097 = vunpack.c.l.b16 %v253
    %v1098 = vunpack.c.h.b16 %v253
    %v1099 = vunpack.c.l.b16 %v254
    %v1100 = vunpack.c.h.b16 %v254
    %v1101 = vunpack.c.l.b16 %v255
    %v1102 = vunpack.c.h.b16 %v255
    %v1103 = vunpack.c.l.b16 %v256
    %v1104 = vunpack.c.h.b16 %v256
    %v1105 = vunpack.c.l.b16 %v257
    %v1106 = vunpack.c.h.b16 %v257
    %v1107 = vunpack.c.l.b16 %v258
    %v1108 = vunpack.c.h.b16 %v258
    %v1109 = vunpack.c.l.b16 %v259
    %v1110 = vunpack.c.h.b16 %v259
    %v1111 = vunpack.c.l.b16 %v260
    %v1112 = vunpack.c.h.b16 %v260
    %v1113 = vunpack.c.l.b16 %v261
    %v1114 = vunpack.c.h.b16 %v261
    %v1115 = vunpack.c.l.b16 %v262
    %v1116 = vunpack.c.h.b16 %v262
    %v1117 = vunpack.c.l.b16 %v263
    %v1118 = vunpack.c.h.b16 %v263
    %v1119 = vunpack.c.l.b16 %v264
    %v1120 = vunpack.c.h.b16 %v264
    %v1121 = vunpack.c.l.b16 %v265
    %v1122 = vunpack.c.h.b16 %v265
    %v1123 = vunpack.c.l.b16 %v266
    %v1124 = vunpack.c.h.b16 %v266
    %v1125 = vunpack.c.l.b16 %v267
    %v1126 = vunpack.c.h.b16 %v267
    %v1127 = vunpack.c.l.b16 %v268
    %v1128 = vunpack.c.h.b16 %v268
    %v1129 = vunpack.c.l.b16 %v269
    %v1130 = vunpack.c.h.b16 %v269
    %v1131 = vunpack.c.l.b16 %v270
    %v1132 = vunpack.c.h.b16 %v270
    %v1133 = vunpack.c.l.b16 %v271
    %v1134 = vunpack.c.h.b16 %v271
    %v1135 = vunpack.c.l.b16 %v272
    %v1136 = vunpack.c.h.b16 %v272
    %v1137 = vunpack.c.l.b16 %v273
    %v1138 = vunpack.c.h.b16 %v273
    %v1139 = vunpack.c.l.b16 %v274
    %v1140 = vunpack.c.h.b16 %v274
    %v1141 = vunpack.c.l.b16 %v275
    %v1142 = vunpack.c.h.b16 %v275
    %v1143 = vunpack.c.l.b16 %v276
    %v1144 = vunpack.c.h.b16 %v276
    %v1145 = vunpack.c.l.b16 %v277
    %v1146 = vunpack.c.h.b16 %v277
    %v1147 = vunpack.c.l.b16 %v278
    %v1148 = vunpack.c.h.b16 %v278
    %v1149 = vunpack.c.l.b16 %v279
    %v1150 = vunpack.c.h.b16 %v279
    %v1151 = vunpack.c.l.b16 %v280
    %v1152 = vunpack.c.h.b16 %v280
    %v1153 = vunpack.c.l.b16 %v281
    %v1154 = vunpack.c.h.b16 %v281
    %v1155 = vunpack.c.l.b16 %v282
    %v1156 = vunpack.c.h.b16 %v282
    %v1157 = vunpack.c.l.b16 %v283
    %v1158 = vunpack.c.h.b16 %v283
    %v1159 = vunpack.c.l.b16 %v284
    %v1160 = vunpack.c.h.b16 %v284
    %v1161 = vunpack.c.l.b16 %v285
    %v1162 = vunpack.c.h.b16 %v285
    %v1163 = vunpack.c.l.b16 %v286
    %v1164 = vunpack.c.h.b16 %v286
    %v1165 = vunpack.c.l.b16 %v287
    %v1166 = vunpack.c.h.b16 %v287
    %v1167 = vunpack.c.l.b16 %v288
    %v1168 = vunpack.c.h.b16 %v288
    %v1169 = vunpack.c.l.b16 %v289
    %v1170 = vunpack.c.h.b16 %v289
    %v1171 = vunpack.c.l.b16 %v290
    %v1172 = vunpack.c.h.b16 %v290
    %v1173 = vunpack.c.l.b16 %v291
    %v1174 = vunpack.c.h.b16 %v291
    %v1175 = vunpack.c.l.b16 %v292
    %v1176 = vunpack.c.h.b16 %v292
    %v1177 = vunpack.c.l.b16 %v293
    %v1178 = vunpack.c.h.b16 %v293
    %v1179 = vunpack.c.l.b16 %v294
    %v1180 = vunpack.c.h.b16 %v294
    %v1181 = vunpack.c.l.b16 %v295
    %v1182 = vunpack.c.h.b16 %v295
    %v1183 = vunpack.c.l.b16 %v296
    %v1184 = vunpack.c.h.b16 %v296
    %v1185 = vunpack.c.l.b16 %v297
    %v1186 = vunpack.c.h.b16 %v297
    %v1187 = vunpack.c.l.b16 %v298
    %v1188 = vunpack.c.h.b16 %v298
    %v1189 = vunpack.c.l.b16 %v299
    %v1190 = vunpack.c.h.b16 %v299
    %v1191 = vunpack.c.l.b16 %v300
    %v1192 = vunpack.c.h.b16 %v300
    %v1193 = vunpack.c.l.b16 %v301
    %v1194 = vunpack.c.h.b16 %v301
    %v1195 = vunpack.c.l.b16 %v302
    %v1196 = vunpack.c.h.b16 %v302
    %v1197 = vunpack.c.l.b16 %v303
    %v1198 = vunpack.c.h.b16 %v303
    %v1199 = vunpack.c.l.b16 %v304
    %v1200 = vunpack.c.h.b16 %v304
    %v1201 = vunpack.c.l.b16 %v305
    %v1202 = vunpack.c.h.b16 %v305
    %v1203 = vunpack.c.l.b16 %v306
    %v1204 = vunpack.c.h.b16 %v306
    %v1205 = vunpack.c.l.b16 %v307
    %v1206 = vunpack.c.h.b16 %v307
    %v1207 = vunpack.c.l.b16 %v308
    %v1208 = vunpack.c.h.b16 %v308
    %v1209 = vunpack.c.l.b16 %v309
    %v1210 = vunpack.c.h.b16 %v309
    %v1211 = vunpack.c.l.b16 %v310
    %v1212 = vunpack.c.h.b16 %v310
    %v1213 = vunpack.c.l.b16 %v311
    %v1214 = vunpack.c.h.b16 %v311
    %v1215 = vunpack.c.l.b16 %v312
    %v1216 = vunpack.c.h.b16 %v312
    %v1217 = vunpack.c.l.b16 %v313
    %v1218 = vunpack.c.h.b16 %v313
    %v1219 = vunpack.c.l.b16 %v314
    %v1220 = vunpack.c.h.b16 %v314
    %v1221 = vunpack.c.l.b16 %v315
    %v1222 = vunpack.c.h.b16 %v315
    %v1223 = vunpack.c.l.b16 %v316
    %v1224 = vunpack.c.h.b16 %v316
    %v1225 = vunpack.c.l.b16 %v317
    %v1226 = vunpack.c.h.b16 %v317
    %v1227 = vunpack.c.l.b16 %v318
    %v1228 = vunpack.c.h.b16 %v318
    %v1229 = vunpack.c.l.b16 %v319
    %v1230 = vunpack.c.h.b16 %v319
    %v1231 = vunpack.c.l.b16 %v320
    %v1232 = vunpack.c.h.b16 %v320
    %v1233 = vunpack.c.l.b16 %v321
    %v1234 = vunpack.c.h.b16 %v321
    %v1235 = vunpack.c.l.b16 %v322
    %v1236 = vunpack.c.h.b16 %v322
    %v1237 = vunpack.c.l.b16 %v323
    %v1238 = vunpack.c.h.b16 %v323
    %v1239 = vunpack.c.l.b16 %v324
    %v1240 = vunpack.c.h.b16 %v324
    %v1241 = vunpack.c.l.b16 %v325
    %v1242 = vunpack.c.h.b16 %v325
    %v1243 = vunpack.c.l.b16 %v326
    %v1244 = vunpack.c.h.b16 %v326
    %v1245 = vunpack.c.l.b16 %v327
    %v1246 = vunpack.c.h.b16 %v327
    %v1247 = vunpack.c.l.b16 %v328
    %v1248 = vunpack.c.h.b16 %v328
    %v1249 = vunpack.c.l.b16 %v329
    %v1250 = vunpack.c.h.b16 %v329
    %v1251 = vunpack.c.l.b16 %v330
    %v1252 = vunpack.c.h.b16 %v330
    %v1253 = vunpack.c.l.b16 %v331
    %v1254 = vunpack.c.h.b16 %v331
    %v1255 = vunpack.c.l.b16 %v332
    %v1256 = vunpack.c.h.b16 %v332
    %v1257 = vunpack.c.l.b16 %v333
    %v1258 = vunpack.c.h.b16 %v333
    %v1259 = vunpack.c.l.b16 %v334
    %v1260 = vunpack.c.h.b16 %v334
    %v1261 = vunpack.c.l.b16 %v335
    %v1262 = vunpack.c.h.b16 %v335
    %v1263 = vunpack.c.l.b16 %v336
    %v1264 = vunpack.c.h.b16 %v336
    %v1265 = vunpack.c.l.b16 %v337
    %v1266 = vunpack.c.h.b16 %v337
    %v1267 = vunpack.c.l.b16 %v338
    %v1268 = vunpack.c.h.b16 %v338
    %v1269 = vunpack.c.l.b16 %v339
    %v1270 = vunpack.c.h.b16 %v339
    %v1271 = vunpack.c.l.b16 %v340
    %v1272 = vunpack.c.h.b16 %v340
    %v1273 = vunpack.c.l.b16 %v341
    %v1274 = vunpack.c.h.b16 %v341
    %v1275 = vunpack.c.l.b16 %v342
    %v1276 = vunpack.c.h.b16 %v342
    %v1277 = vunpack.c.l.b16 %v343
    %v1278 = vunpack.c.h.b16 %v343
    %v1279 = vunpack.c.l.b16 %v344
    %v1280 = vunpack.c.h.b16 %v344
    %v1281 = vunpack.c.l.b16 %v345
    %v1282 = vunpack.c.h.b16 %v345
    %v1283 = vunpack.c.l.b16 %v346
    %v1284 = vunpack.c.h.b16 %v346
    %v1285 = vunpack.c.l.b16 %v347
    %v1286 = vunpack.c.h.b16 %v347
    %v1287 = vunpack.c.l.b16 %v348
    %v1288 = vunpack.c.h.b16 %v348
    %v1289 = vunpack.c.l.b16 %v349
    %v1290 = vunpack.c.h.b16 %v349
    %v1291 = vunpack.c.l.b16 %v350
    %v1292 = vunpack.c.h.b16 %v350
    %v1293 = vunpack.c.l.b16 %v351
    %v1294 = vunpack.c.h.b16 %v351
    %v1295 = vunpack.c.l.b16 %v352
    %v1296 = vunpack.c.h.b16 %v352
    %v1297 = vunpack.c.l.b16 %v353
    %v1298 = vunpack.c.h.b16 %v353
    %v1299 = vunpack.c.l.b16 %v354
    %v1300 = vunpack.c.h.b16 %v354
    %v1301 = vunpack.c.l.b16 %v355
    %v1302 = vunpack.c.h.b16 %v355
    %v1303 = vunpack.c.l.b16 %v356
    %v1304 = vunpack.c.h.b16 %v356
    %v1305 = vunpack.c.l.b16 %v357
    %v1306 = vunpack.c.h.b16 %v357
    %v1307 = vunpack.c.l.b16 %v358
    %v1308 = vunpack.c.h.b16 %v358
    %v1309 = vunpack.c.l.b16 %v359
    %v1310 = vunpack.c.h.b16 %v359
    %v1311 = vunpack.c.l.b16 %v360
    %v1312 = vunpack.c.h.b16 %v360
    %v1313 = vunpack.c.l.b16 %v361
    %v1314 = vunpack.c.h.b16 %v361
    %v1315 = vunpack.c.l.b16 %v362
    %v1316 = vunpack.c.h.b16 %v362
    %v1317 = vunpack.c.l.b16 %v363
    %v1318 = vunpack.c.h.b16 %v363
    %v1319 = vunpack.c.l.b16 %v364
    %v1320 = vunpack.c.h.b16 %v364
    %v1321 = vunpack.c.l.b16 %v365
    %v1322 = vunpack.c.h.b16 %v365
    %v1323 = vunpack.c.l.b16 %v366
    %v1324 = vunpack.c.h.b16 %v366
    %v1325 = vunpack.c.l.b16 %v367
    %v1326 = vunpack.c.h.b16 %v367
    %v1327 = vunpack.c.l.b16 %v368
    %v1328 = vunpack.c.h.b16 %v368
    %v1329 = vunpack.c.l.b16 %v369
    %v1330 = vunpack.c.h.b16 %v369
    %v1331 = vunpack.c.l.b16 %v370
    %v1332 = vunpack.c.h.b16 %v370
    %v1333 = vunpack.c.l.b16 %v371
    %v1334 = vunpack.c.h.b16 %v371
    %v1335 = vunpack.c.l.b16 %v372
    %v1336 = vunpack.c.h.b16 %v372
    %v1337 = vunpack.c.l.b16 %v373
    %v1338 = vunpack.c.h.b16 %v373
    %v1339 = vunpack.c.l.b16 %v374
    %v1340 = vunpack.c.h.b16 %v374
    %v1341 = vunpack.c.l.b16 %v375
    %v1342 = vunpack.c.h.b16 %v375
    %v1343 = vunpack.c.l.b16 %v376
    %v1344 = vunpack.c.h.b16 %v376
    %v1345 = vunpack.c.l.b16 %v377
    %v1346 = vunpack.c.h.b16 %v377
    %v1347 = vunpack.c.l.b16 %v378
    %v1348 = vunpack.c.h.b16 %v378
    %v1349 = vunpack.c.l.b16 %v379
    %v1350 = vunpack.c.h.b16 %v379
    %v1351 = vunpack.c.l.b16 %v380
    %v1352 = vunpack.c.h.b16 %v380
    %v1353 = vunpack.c.l.b16 %v381
    %v1354 = vunpack.c.h.b16 %v381
    %v1355 = vunpack.c.l.b16 %v382
    %v1356 = vunpack.c.h.b16 %v382
    %v1357 = vunpack.c.l.b16 %v383
    %v1358 = vunpack.c.h.b16 %v383
    %v1359 = vunpack.c.l.b16 %v384
    %v1360 = vunpack.c.h.b16 %v384
    %v1361 = vunpack.c.l.b16 %v385
    %v1362 = vunpack.c.h.b16 %v385
    %v1363 = vunpack.c.l.b16 %v386
    %v1364 = vunpack.c.h.b16 %v386
    %v1365 = vunpack.c.l.b16 %v387
    %v1366 = vunpack.c.h.b16 %v387
    %v1367 = vunpack.c.l.b16 %v388
    %v1368 = vunpack.c.h.b16 %v388
    %v1369 = vunpack.c.l.b16 %v389
    %v1370 = vunpack.c.h.b16 %v389
    %v1371 = vunpack.c.l.b16 %v390
    %v1372 = vunpack.c.h.b16 %v390
    %v1373 = vunpack.c.l.b16 %v391
    %v1374 = vunpack.c.h.b16 %v391
    %v1375 = vunpack.c.l.b16 %v392
    %v1376 = vunpack.c.h.b16 %v392
    %v1377 = vunpack.c.l.b16 %v393
    %v1378 = vunpack.c.h.b16 %v393
    %v1379 = vunpack.c.l.b16 %v394
    %v1380 = vunpack.c.h.b16 %v394
    %v1381 = vunpack.c.l.b16 %v395
    %v1382 = vunpack.c.h.b16 %v395
    %v1383 = vunpack.c.l.b16 %v396
    %v1384 = vunpack.c.h.b16 %v396
    %v1385 = vunpack.c.l.b16 %v397
    %v1386 = vunpack.c.h.b16 %v397
    %v1387 = vunpack.c.l.b16 %v398
    %v1388 = vunpack.c.h.b16 %v398
    %v1389 = vunpack.c.l.b16 %v399
    %v1390 = vunpack.c.h.b16 %v399
    %v1391 = vunpack.c.l.b16 %v400
    %v1392 = vunpack.c.h.b16 %v400
    %v1393 = vunpack.c.l.b16 %v401
    %v1394 = vunpack.c.h.b16 %v401
    %v1395 = vunpack.c.l.b16 %v402
    %v1396 = vunpack.c.h.b16 %v402
    %v1397 = vunpack.c.l.b16 %v403
    %v1398 = vunpack.c.h.b16 %v403
    %v1399 = vunpack.c.l.b16 %v404
    %v1400 = vunpack.c.h.b16 %v404
    %v1401 = vunpack.c.l.b16 %v405
    %v1402 = vunpack.c.h.b16 %v405
    %v1403 = vunpack.c.l.b16 %v406
    %v1404 = vunpack.c.h.b16 %v406
    %v1405 = vunpack.c.l.b16 %v407
    %v1406 = vunpack.c.h.b16 %v407
    %v1407 = vunpack.c.l.b16 %v408
    %v1408 = vunpack.c.h.b16 %v408
    %v1409 = vunpack.c.l.b16 %v409
    %v1410 = vunpack.c.h.b16 %v409
    %v1411 = vunpack.c.l.b16 %v410
    %v1412 = vunpack.c.h.b16 %v410
    %v1413 = vunpack.c.l.b16 %v411
    %v1414 = vunpack.c.h.b16 %v411
    %v1415 = vunpack.c.l.b16 %v412
    %v1416 = vunpack.c.h.b16 %v412
    %v1417 = vunpack.c.l.b16 %v413
    %v1418 = vunpack.c.h.b16 %v413
    %v1419 = vunpack.c.l.b16 %v414
    %v1420 = vunpack.c.h.b16 %v414
    %v1421 = vunpack.c.l.b16 %v415
    %v1422 = vunpack.c.h.b16 %v415
    %v1423 = vunpack.c.l.b16 %v416
    %v1424 = vunpack.c.h.b16 %v416
    %v1425 = vunpack.c.l.b16 %v417
    %v1426 = vunpack.c.h.b16 %v417
    %v1427 = vunpack.c.l.b16 %v418
    %v1428 = vunpack.c.h.b16 %v418
    %v1429 = vunpack.c.l.b16 %v419
    %v1430 = vunpack.c.h.b16 %v419
    %v1431 = vunpack.c.l.b16 %v420
    %v1432 = vunpack.c.h.b16 %v420
    %v1433 = vunpack.c.l.b16 %v421
    %v1434 = vunpack.c.h.b16 %v421
    %v1435 = vunpack.c.l.b16 %v422
    %v1436 = vunpack.c.h.b16 %v422
    %v1437 = vunpack.c.l.b16 %v423
    %v1438 = vunpack.c.h.b16 %v423
    %v1439 = vunpack.c.l.b16 %v424
    %v1440 = vunpack.c.h.b16 %v424
    %v1441 = vunpack.c.l.b16 %v425
    %v1442 = vunpack.c.h.b16 %v425
    %v1443 = vunpack.c.l.b16 %v426
    %v1444 = vunpack.c.h.b16 %v426
    %v1445 = vunpack.c.l.b16 %v427
    %v1446 = vunpack.c.h.b16 %v427
    %v1447 = vunpack.c.l.b16 %v428
    %v1448 = vunpack.c.h.b16 %v428
    %v1449 = vunpack.c.l.b16 %v429
    %v1450 = vunpack.c.h.b16 %v429
    %v1451 = vunpack.c.l.b16 %v430
    %v1452 = vunpack.c.h.b16 %v430
    %v1453 = vunpack.c.l.b16 %v431
    %v1454 = vunpack.c.h.b16 %v431
    %v1455 = vunpack.c.l.b16 %v432
    %v1456 = vunpack.c.h.b16 %v432
    %v1457 = vunpack.c.l.b16 %v433
    %v1458 = vunpack.c.h.b16 %v433
    %v1459 = vunpack.c.l.b16 %v434
    %v1460 = vunpack.c.h.b16 %v434
    %v1461 = vunpack.c.l.b16 %v435
    %v1462 = vunpack.c.h.b16 %v435
    %v1463 = vunpack.c.l.b16 %v436
    %v1464 = vunpack.c.h.b16 %v436
    %v1465 = vunpack.c.l.b16 %v437
    %v1466 = vunpack.c.h.b16 %v437
    %v1467 = vunpack.c.l.b16 %v438
    %v1468 = vunpack.c.h.b16 %v438
    %v1469 = vunpack.c.l.b16 %v439
    %v1470 = vunpack.c.h.b16 %v439
    %v1471 = vunpack.c.l.b16 %v440
    %v1472 = vunpack.c.h.b16 %v440
    %v1473 = vunpack.c.l.b16 %v441
    %v1474 = vunpack.c.h.b16 %v441
    %v1475 = vunpack.c.l.b16 %v442
    %v1476 = vunpack.c.h.b16 %v442
    %v1477 = vunpack.c.l.b16 %v443
    %v1478 = vunpack.c.h.b16 %v443
    %v1479 = vunpack.c.l.b16 %v444
    %v1480 = vunpack.c.h.b16 %v444
    %v1481 = vunpack.c.l.b16 %v445
    %v1482 = vunpack.c.h.b16 %v445
    %v1483 = vunpack.c.l.b16 %v446
    %v1484 = vunpack.c.h.b16 %v446
    %v1485 = vunpack.c.l.b16 %v447
    %v1486 = vunpack.c.h.b16 %v447
    %v1487 = vunpack.c.l.b16 %v448
    %v1488 = vunpack.c.h.b16 %v448
    %v1489 = vunpack.c.l.b16 %v449
    %v1490 = vunpack.c.h.b16 %v449
    %v1491 = vunpack.c.l.b16 %v450
    %v1492 = vunpack.c.h.b16 %v450
    %v1493 = vunpack.c.l.b16 %v451
    %v1494 = vunpack.c.h.b16 %v451
    %v1495 = vunpack.c.l.b16 %v452
    %v1496 = vunpack.c.h.b16 %v452
    %v1497 = vunpack.c.l.b16 %v453
    %v1498 = vunpack.c.h.b16 %v453
    %v1499 = vunpack.c.l.b16 %v454
    %v1500 = vunpack.c.h.b16 %v454
    %v1501 = vunpack.c.l.b16 %v455
    %v1502 = vunpack.c.h.b16 %v455
    %v1503 = vunpack.c.l.b16 %v456
    %v1504 = vunpack.c.h.b16 %v456
    %v1505 = vunpack.c.l.b16 %v457
    %v1506 = vunpack.c.h.b16 %v457
    %v1507 = vunpack.c.l.b16 %v458
    %v1508 = vunpack.c.h.b16 %v458
    %v1509 = vunpack.c.l.b16 %v459
    %v1510 = vunpack.c.h.b16 %v459
    %v1511 = vunpack.c.l.b16 %v460
    %v1512 = vunpack.c.h.b16 %v460
    %v1513 = vunpack.c.l.b16 %v461
    %v1514 = vunpack.c.h.b16 %v461
    %v1515 = vunpack.c.l.b16 %v462
    %v1516 = vunpack.c.h.b16 %v462
    %v1517 = vunpack.c.l.b16 %v463
    %v1518 = vunpack.c.h.b16 %v463
    %v1519 = vunpack.c.l.b16 %v464
    %v1520 = vunpack.c.h.b16 %v464
    %v1521 = vunpack.c.l.b16 %v465
    %v1522 = vunpack.c.h.b16 %v465
    %v1523 = vunpack.c.l.b16 %v466
    %v1524 = vunpack.c.h.b16 %v466
    %v1525 = vunpack.c.l.b16 %v467
    %v1526 = vunpack.c.h.b16 %v467
    %v1527 = vunpack.c.l.b16 %v468
    %v1528 = vunpack.c.h.b16 %v468
    %v1529 = vunpack.c.l.b16 %v469
    %v1530 = vunpack.c.h.b16 %v469
    %v1531 = vunpack.c.l.b16 %v470
    %v1532 = vunpack.c.h.b16 %v470
    %v1533 = vunpack.c.l.b16 %v471
    %v1534 = vunpack.c.h.b16 %v471
    %v1535 = vunpack.c.l.b16 %v472
    %v1536 = vunpack.c.h.b16 %v472
    %v1537 = vunpack.c.l.b16 %v473
    %v1538 = vunpack.c.h.b16 %v473
    %v1539 = vunpack.c.l.b16 %v474
    %v1540 = vunpack.c.h.b16 %v474
    %v1541 = vunpack.c.l.b16 %v475
    %v1542 = vunpack.c.h.b16 %v475
    %v1543 = vunpack.c.l.b16 %v476
    %v1544 = vunpack.c.h.b16 %v476
    %v1545 = vunpack.c.l.b16 %v477
    %v1546 = vunpack.c.h.b16 %v477
    %v1547 = vunpack.c.l.b16 %v478
    %v1548 = vunpack.c.h.b16 %v478
    %v1549 = vunpack.c.l.b16 %v479
    %v1550 = vunpack.c.h.b16 %v479
    %v1551 = vunpack.c.l.b16 %v480
    %v1552 = vunpack.c.h.b16 %v480
    %v1553 = vunpack.c.l.b16 %v481
    %v1554 = vunpack.c.h.b16 %v481
    %v1555 = vunpack.c.l.b16 %v482
    %v1556 = vunpack.c.h.b16 %v482
    %v1557 = vunpack.c.l.b16 %v483
    %v1558 = vunpack.c.h.b16 %v483
    %v1559 = vunpack.c.l.b16 %v484
    %v1560 = vunpack.c.h.b16 %v484
    %v1561 = vunpack.c.l.b16 %v485
    %v1562 = vunpack.c.h.b16 %v485
    %v1563 = vunpack.c.l.b16 %v486
    %v1564 = vunpack.c.h.b16 %v486
    %v1565 = vunpack.c.l.b16 %v487
    %v1566 = vunpack.c.h.b16 %v487
    %v1567 = vunpack.c.l.b16 %v488
    %v1568 = vunpack.c.h.b16 %v488
    %v1569 = vunpack.c.l.b16 %v489
    %v1570 = vunpack.c.h.b16 %v489
    %v1571 = vunpack.c.l.b16 %v490
    %v1572 = vunpack.c.h.b16 %v490
    %v1573 = vunpack.c.l.b16 %v491
    %v1574 = vunpack.c.h.b16 %v491
    %v1575 = vunpack.c.l.b16 %v492
    %v1576 = vunpack.c.h.b16 %v492
    %v1577 = vunpack.c.l.b16 %v493
    %v1578 = vunpack.c.h.b16 %v493
    %v1579 = vunpack.c.l.b16 %v494
    %v1580 = vunpack.c.h.b16 %v494
    %v1581 = vunpack.c.l.b16 %v495
    %v1582 = vunpack.c.h.b16 %v495
    %v1583 = vunpack.c.l.b16 %v496
    %v1584 = vunpack.c.h.b16 %v496
    %v1585 = vunpack.c.l.b16 %v497
    %v1586 = vunpack.c.h.b16 %v497
    %v1587 = vunpack.c.l.b16 %v498
    %v1588 = vunpack.c.h.b16 %v498
    %v1589 = vunpack.c.l.b16 %v499
    %v1590 = vunpack.c.h.b16 %v499
    %v1591 = vunpack.c.l.b16 %v500
    %v1592 = vunpack.c.h.b16 %v500
    %v1593 = vunpack.c.l.b16 %v501
    %v1594 = vunpack.c.h.b16 %v501
    %v1595 = vunpack.c.l.b16 %v502
    %v1596 = vunpack.c.h.b16 %v502
    %v1597 = vunpack.c.l.b16 %v503
    %v1598 = vunpack.c.h.b16 %v503
    %v1599 = vunpack.c.l.b16 %v504
    %v1600 = vunpack.c.h.b16 %v504
    %v1601 = vunpack.c.l.b16 %v505
    %v1602 = vunpack.c.h.b16 %v505
    %v1603 = vunpack.c.l.b16 %v506
    %v1604 = vunpack.c.h.b16 %v506
    %v1605 = vunpack.c.l.b16 %v507
    %v1606 = vunpack.c.h.b16 %v507
    %v1607 = vunpack.c.l.b16 %v508
    %v1608 = vunpack.c.h.b16 %v508
    %v1609 = vunpack.c.l.b16 %v509
    %v1610 = vunpack.c.h.b16 %v509
    %v1611 = vunpack.c.l.b16 %v510
    %v1612 = vunpack.c.h.b16 %v510
    %v1613 = vunpack.c.l.b16 %v511
    %v1614 = vunpack.c.h.b16 %v511
    %v1615 = vunpack.c.l.b16 %v512
    %v1616 = vunpack.c.h.b16 %v512
    %v1617 = vunpack.c.l.b16 %v513
    %v1618 = vunpack.c.h.b16 %v513
    %v1619 = vunpack.c.l.b16 %v514
    %v1620 = vunpack.c.h.b16 %v514
    %v1621 = vunpack.c.l.b16 %v515
    %v1622 = vunpack.c.h.b16 %v515
    %v1623 = vunpack.c.l.b16 %v516
    %v1624 = vunpack.c.h.b16 %v516
    %v1625 = vunpack.c.l.b16 %v517
    %v1626 = vunpack.c.h.b16 %v517
    %v1627 = vunpack.c.l.b16 %v518
    %v1628 = vunpack.c.h.b16 %v518
    %v1629 = vunpack.c.l.b16 %v519
    %v1630 = vunpack.c.h.b16 %v519
    %v1631 = vunpack.c.l.b16 %v520
    %v1632 = vunpack.c.h.b16 %v520
    %v1633 = vunpack.c.l.b16 %v521
    %v1634 = vunpack.c.h.b16 %v521
    %v1635 = vunpack.c.l.b16 %v522
    %v1636 = vunpack.c.h.b16 %v522
    %v1637 = vunpack.c.l.b16 %v523
    %v1638 = vunpack.c.h.b16 %v523
    %v1639 = vunpack.c.l.b16 %v524
    %v1640 = vunpack.c.h.b16 %v524
    %v1641 = vunpack.c.l.b16 %v525
    %v1642 = vunpack.c.h.b16 %v525
    %v1643 = vunpack.c.l.b16 %v526
    %v1644 = vunpack.c.h.b16 %v526
    %v1645 = vunpack.c.l.b16 %v527
    %v1646 = vunpack.c.h.b16 %v527
    %v1647 = vunpack.c.l.b16 %v528
    %v1648 = vunpack.c.h.b16 %v528
    %v1649 = vunpack.c.l.b16 %v529
    %v1650 = vunpack.c.h.b16 %v529
    %v1651 = vunpack.c.l.b16 %v530
    %v1652 = vunpack.c.h.b16 %v530
    %v1653 = vunpack.c.l.b16 %v531
    %v1654 = vunpack.c.h.b16 %v531
    %v1655 = vunpack.c.l.b16 %v532
    %v1656 = vunpack.c.h.b16 %v532
    %v1657 = vunpack.c.l.b16 %v533
    %v1658 = vunpack.c.h.b16 %v533
    %v1659 = vunpack.c.l.b16 %v534
    %v1660 = vunpack.c.h.b16 %v534
    %v1661 = vunpack.c.l.b16 %v535
    %v1662 = vunpack.c.h.b16 %v535
    %v1663 = vunpack.c.l.b16 %v536
    %v1664 = vunpack.c.h.b16 %v536
    %v1665 = vunpack.c.l.b16 %v537
    %v1666 = vunpack.c.h.b16 %v537
    %v1667 = vunpack.c.l.b16 %v538
    %v1668 = vunpack.c.h.b16 %v538
    %v1669 = vunpack.c.l.b16 %v539
    %v1670 = vunpack.c.h.b16 %v539
    %v1671 = vunpack.c.l.b16 %v540
    %v1672 = vunpack.c.h.b16 %v540
    %v1673 = vunpack.c.l.b16 %v541
    %v1674 = vunpack.c.h.b16 %v541
    %v1675 = vunpack.c.l.b16 %v542
    %v1676 = vunpack.c.h.b16 %v542
    %v1677 = vunpack.c.l.b16 %v543
    %v1678 = vunpack.c.h.b16 %v543
    %v1679 = vunpack.c.l.b16 %v544
    %v1680 = vunpack.c.h.b16 %v544
    %v1681 = vunpack.c.l.b16 %v545
    %v1682 = vunpack.c.h.b16 %v545
    %v1683 = vunpack.c.l.b16 %v546
    %v1684 = vunpack.c.h.b16 %v546
    %v1685 = vunpack.c.l.b16 %v547
    %v1686 = vunpack.c.h.b16 %v547
    %v1687 = vunpack.c.l.b16 %v548
    %v1688 = vunpack.c.h.b16 %v548
    %v1689 = vunpack.c.l.b16 %v549
    %v1690 = vunpack.c.h.b16 %v549
    %v1691 = vunpack.c.l.b16 %v550
    %v1692 = vunpack.c.h.b16 %v550
    %v1693 = vunpack.c.l.b16 %v551
    %v1694 = vunpack.c.h.b16 %v551
    %v1695 = vunpack.c.l.b16 %v552
    %v1696 = vunpack.c.h.b16 %v552
    %v1697 = vunpack.c.l.b16 %v553
    %v1698 = vunpack.c.h.b16 %v553
    %v1699 = vunpack.c.l.b16 %v554
    %v1700 = vunpack.c.h.b16 %v554
    %v1701 = vunpack.c.l.b16 %v555
    %v1702 = vunpack.c.h.b16 %v555
    %v1703 = vunpack.c.l.b16 %v556
    %v1704 = vunpack.c.h.b16 %v556
    %v1705 = vunpack.c.l.b16 %v557
    %v1706 = vunpack.c.h.b16 %v557
    %v1707 = vunpack.c.l.b16 %v558
    %v1708 = vunpack.c.h.b16 %v558
    %v1709 = vunpack.c.l.b16 %v559
    %v1710 = vunpack.c.h.b16 %v559
    %v1711 = vunpack.c.l.b16 %v560
    %v1712 = vunpack.c.h.b16 %v560
    %v1713 = vunpack.c.l.b16 %v561
    %v1714 = vunpack.c.h.b16 %v561
    %v1715 = vunpack.c.l.b16 %v562
    %v1716 = vunpack.c.h.b16 %v562
    %v1717 = vunpack.c.l.b16 %v563
    %v1718 = vunpack.c.h.b16 %v563
    %v1719 = vunpack.c.l.b16 %v564
    %v1720 = vunpack.c.h.b16 %v564
    %v1721 = vunpack.c.l.b16 %v565
    %v1722 = vunpack.c.h.b16 %v565
    %v1723 = vunpack.c.l.b16 %v566
    %v1724 = vunpack.c.h.b16 %v566
    %v1725 = vunpack.c.l.b16 %v567
    %v1726 = vunpack.c.h.b16 %v567
    %v1727 = vunpack.c.l.b16 %v568
    %v1728 = vunpack.c.h.b16 %v568
    %v1729 = vunpack.c.l.b16 %v569
    %v1730 = vunpack.c.h.b16 %v569
    %v1731 = vunpack.c.l.b16 %v570
    %v1732 = vunpack.c.h.b16 %v570
    %v1733 = vunpack.c.l.b16 %v571
    %v1734 = vunpack.c.h.b16 %v571
    %v1735 = vunpack.c.l.b16 %v572
    %v1736 = vunpack.c.h.b16 %v572
    %v1737 = vpack.c.b16 %v971, %v969
    %v1738 = vpack.c.b16 %v972, %v970
    %v1739 = vpack.c.b16 %v975, %v973
    %v1740 = vpack.c.b16 %v976, %v974
    %v1741 = vpack.c.b16 %v979, %v977
    %v1742 = vpack.c.b16 %v980, %v978
    %v1743 = vpack.c.b16 %v983, %v981
    %v1744 = vpack.c.b16 %v984, %v982
    %v1745 = vpack.c.b16 %v987, %v985
    %v1746 = vpack.c.b16 %v988, %v986
    %v1747 = vpack.c.b16 %v991, %v989
    %v1748 = vpack.c.b16 %v992, %v990
    %v1749 = vpack.c.b16 %v995, %v993
    %v1750 = vpack.c.b16 %v996, %v994
    %v1751 = vpack.c.b16 %v999, %v997
    %v1752 = vpack.c.b16 %v1000, %v998
    %v1753 = vpack.c.b16 %v1003, %v1001
    %v1754 = vpack.c.b16 %v1004, %v1002
    %v1755 = vpack.c.b16 %v1007, %v1005
    %v1756 = vpack.c.b16 %v1008, %v1006
    %v1757 = vpack.c.b16 %v1011, %v1009
    %v1758 = vpack.c.b16 %v1012, %v1010
    %v1759 = vpack.c.b16 %v1015, %v1013
    %v1760 = vpack.c.b16 %v1016, %v1014
    %v1761 = vpack.c.b16 %v1019, %v1017
    %v1762 = vpack.c.b16 %v1020, %v1018
    %v1763 = vpack.c.b16 %v1023, %v1021
    %v1764 = vpack.c.b16 %v1024, %v1022
    %v1765 = vpack.c.b16 %v1027, %v1025
    %v1766 = vpack.c.b16 %v1028, %v1026
    %v1767 = vpack.c.b16 %v1031, %v1029
    %v1768 = vpack.c.b16 %v1032, %v1030
    %v1769 = vpack.c.b16 %v1035, %v1033
    %v1770 = vpack.c.b16 %v1036, %v1034
    %v1771 = vpack.c.b16 %v1039, %v1037
    %v1772 = vpack.c.b16 %v1040, %v1038
    %v1773 = vpack.c.b16 %v1043, %v1041
    %v1774 = vpack.c.b16 %v1044, %v1042
    %v1775 = vpack.c.b16 %v1047, %v1045
    %v1776 = vpack.c.b16 %v1048, %v1046
    %v1777 = vpack.c.b16 %v1051, %v1049
    %v1778 = vpack.c.b16 %v1052, %v1050
    %v1779 = vpack.c.b16 %v1055, %v1053
    %v1780 = vpack.c.b16 %v1056, %v1054
    %v1781 = vpack.c.b16 %v1059, %v1057
    %v1782 = vpack.c.b16 %v1060, %v1058
    %v1783 = vpack.c.b16 %v1063, %v1061
    %v1784 = vpack.c.b16 %v1064, %v1062
    %v1785 = vpack.c.b16 %v1067, %v1065
    %v1786 = vpack.c.b16 %v1068, %v1066
    %v1787 = vpack.c.b16 %v1071, %v1069
    %v1788 = vpack.c.b16 %v1072, %v1070
    %v1789 = vpack.c.b16 %v1075, %v1073
    %v1790 = vpack.c.b16 %v1076, %v1074
    %v1791 = vpack.c.b16 %v1079, %v1077
    %v1792 = vpack.c.b16 %v1080, %v1078
    %v1793 = vpack.c.b16 %v1083, %v1081
    %v1794 = vpack.c.b16 %v1084, %v1082
    %v1795 = vpack.c.b16 %v1087, %v1085
    %v1796 = vpack.c.b16 %v1088, %v1086
    %v1797 = vpack.c.b16 %v1091, %v1089
    %v1798 = vpack.c.b16 %v1092, %v1090
    %v1799 = vpack.c.b16 %v1095, %v1093
    %v1800 = vpack.c.b16 %v1096, %v1094
    %v1801 = vpack.c.b16 %v1099, %v1097
    %v1802 = vpack.c.b16 %v1100, %v1098
    %v1803 = vpack.c.b16 %v1103, %v1101
    %v1804 = vpack.c.b16 %v1104, %v1102
    %v1805 = vpack.c.b16 %v1107, %v1105
    %v1806 = vpack.c.b16 %v1108, %v1106
    %v1807 = vpack.c.b16 %v1111, %v1109
    %v1808 = vpack.c.b16 %v1112, %v1110
    %v1809 = vpack.c.b16 %v1115, %v1113
    %v1810 = vpack.c.b16 %v1116, %v1114
    %v1811 = vpack.c.b16 %v1119, %v1117
    %v1812 = vpack.c.b16 %v1120, %v1118
    %v1813 = vpack.c.b16 %v1123, %v1121
    %v1814 = vpack.c.b16 %v1124, %v1122
    %v1815 = vpack.c.b16 %v1127, %v1125
    %v1816 = vpack.c.b16 %v1128, %v1126
    %v1817 = vpack.c.b16 %v1131, %v1129
    %v1818 = vpack.c.b16 %v1132, %v1130
    %v1819 = vpack.c.b16 %v1135, %v1133
    %v1820 = vpack.c.b16 %v1136, %v1134
    %v1821 = vpack.c.b16 %v1139, %v1137
    %v1822 = vpack.c.b16 %v1140, %v1138
    %v1823 = vpack.c.b16 %v1143, %v1141
    %v1824 = vpack.c.b16 %v1144, %v1142
    %v1825 = vpack.c.b16 %v1147, %v1145
    %v1826 = vpack.c.b16 %v1148, %v1146
    %v1827 = vpack.c.b16 %v1151, %v1149
    %v1828 = vpack.c.b16 %v1152, %v1150
    %v1829 = vpack.c.b16 %v1155, %v1153
    %v1830 = vpack.c.b16 %v1156, %v1154
    %v1831 = vpack.c.b16 %v1159, %v1157
    %v1832 = vpack.c.b16 %v1160, %v1158
    %v1833 = vpack.c.b16 %v1163, %v1161
    %v1834 = vpack.c.b16 %v1164, %v1162
    %v1835 = vpack.c.b16 %v1167, %v1165
    %v1836 = vpack.c.b16 %v1168, %v1166
    %v1837 = vpack.c.b16 %v1171, %v1169
    %v1838 = vpack.c.b16 %v1172, %v1170
    %v1839 = vpack.c.b16 %v1175, %v1173
    %v1840 = vpack.c.b16 %v1176, %v1174
    %v1841 = vpack.c.b16 %v1179, %v1177
    %v1842 = vpack.c.b16 %v1180, %v1178
    %v1843 = vpack.c.b16 %v1183, %v1181
    %v1844 = vpack.c.b16 %v1184, %v1182
    %v1845 = vpack.c.b16 %v1187, %v1185
    %v1846 = vpack.c.b16 %v1188, %v1186
    %v1847 = vpack.c.b16 %v1191, %v1189
    %v1848 = vpack.c.b16 %v1192, %v1190
    %v1849 = vpack.c.b16 %v1195, %v1193
    %v1850 = vpack.c.b16 %v1196, %v1194
    %v1851 = vpack.c.b16 %v1199, %v1197
    %v1852 = vpack.c.b16 %v1200, %v1198
    %v1853 = vpack.c.b16 %v1203, %v1201
    %v1854 = vpack.c.b16 %v1204, %v1202
    %v1855 = vpack.c.b16 %v1207, %v1205
    %v1856 = vpack.c.b16 %v1208, %v1206
    %v1857 = vpack.c.b16 %v1211, %v1209
    %v1858 = vpack.c.b16 %v1212, %v1210
    %v1859 = vpack.c.b16 %v1215, %v1213
    %v1860 = vpack.c.b16 %v1216, %v1214
    %v1861 = vpack.c.b16 %v1219, %v1217
    %v1862 = vpack.c.b16 %v1220, %v1218
    %v1863 = vpack.c.b16 %v1223, %v1221
    %v1864 = vpack.c.b16 %v1224, %v1222
    %v1865 = vpack.c.b16 %v1227, %v1225
    %v1866 = vpack.c.b16 %v1228, %v1226
    %v1867 = vpack.c.b16 %v1231, %v1229
    %v1868 = vpack.c.b16 %v1232, %v1230
    %v1869 = vpack.c.b16 %v1235, %v1233
    %v1870 = vpack.c.b16 %v1236, %v1234
    %v1871 = vpack.c.b16 %v1239, %v1237
    %v1872 = vpack.c.b16 %v1240, %v1238
    %v1873 = vpack.c.b16 %v1243, %v1241
    %v1874 = vpack.c.b16 %v1244, %v1242
    %v1875 = vpack.c.b16 %v1247, %v1245
    %v1876 = vpack.c.b16 %v1248, %v1246
    %v1877 = vpack.c.b16 %v1251, %v1249
    %v1878 = vpack.c.b16 %v1252, %v1250
    %v1879 = vpack.c.b16 %v1255, %v1253
    %v1880 = vpack.c.b16 %v1256, %v1254
    %v1881 = vpack.c.b16 %v1259, %v1257
    %v1882 = vpack.c.b16 %v1260, %v1258
    %v1883 = vpack.c.b16 %v1263, %v1261
    %v1884 = vpack.c.b16 %v1264, %v1262
    %v1885 = vpack.c.b16 %v1267, %v1265
    %v1886 = vpack.c.b16 %v1268, %v1266
    %v1887 = vpack.c.b16 %v1271, %v1269
    %v1888 = vpack.c.b16 %v1272, %v1270
    %v1889 = vpack.c.b16 %v1275, %v1273
    %v1890 = vpack.c.b16 %v1276, %v1274
    %v1891 = vpack.c.b16 %v1279, %v1277
    %v1892 = vpack.c.b16 %v1280, %v1278
    %v1893 = vpack.c.b16 %v1283, %v1281
    %v1894 = vpack.c.b16 %v1284, %v1282
    %v1895 = vpack.c.b16 %v1287, %v1285
    %v1896 = vpack.c.b16 %v1288, %v1286
    %v1897 = vpack.c.b16 %v1291, %v1289
    %v1898 = vpack.c.b16 %v1292, %v1290
    %v1899 = vpack.c.b16 %v1295, %v1293
    %v1900 = vpack.c.b16 %v1296, %v1294
    %v1901 = vpack.c.b16 %v1299, %v1297
    %v1902 = vpack.c.b16 %v1300, %v1298
    %v1903 = vpack.c.b16 %v1303, %v1301
    %v1904 = vpack.c.b16 %v1304, %v1302
    %v1905 = vpack.c.b16 %v1307, %v1305
    %v1906 = vpack.c.b16 %v1308, %v1306
    %v1907 = vpack.c.b16 %v1311, %v1309
    %v1908 = vpack.c.b16 %v1312, %v1310
    %v1909 = vpack.c.b16 %v1315, %v1313
    %v1910 = vpack.c.b16 %v1316, %v1314
    %v1911 = vpack.c.b16 %v1319, %v1317
    %v1912 = vpack.c.b16 %v1320, %v1318
    %v1913 = vpack.c.b16 %v1323, %v1321
    %v1914 = vpack.c.b16 %v1324, %v1322
    %v1915 = vpack.c.b16 %v1327, %v1325
    %v1916 = vpack.c.b16 %v1328, %v1326
    %v1917 = vpack.c.b16 %v1331, %v1329
    %v1918 = vpack.c.b16 %v1332, %v1330
    %v1919 = vpack.c.b16 %v1335, %v1333
    %v1920 = vpack.c.b16 %v1336, %v1334
    %v1921 = vpack.c.b16 %v1339, %v1337
    %v1922 = vpack.c.b16 %v1340, %v1338
    %v1923 = vpack.c.b16 %v1343, %v1341
    %v1924 = vpack.c.b16 %v1344, %v1342
    %v1925 = vpack.c.b16 %v1347, %v1345
    %v1926 = vpack.c.b16 %v1348, %v1346
    %v1927 = vpack.c.b16 %v1351, %v1349
    %v1928 = vpack.c.b16 %v1352, %v1350
    %v1929 = vpack.c.b16 %v1355, %v1353
    %v1930 = vpack.c.b16 %v1356, %v1354
    %v1931 = vpack.c.b16 %v1359, %v1357
    %v1932 = vpack.c.b16 %v1360, %v1358
    %v1933 = vpack.c.b16 %v1363, %v1361
    %v1934 = vpack.c.b16 %v1364, %v1362
    %v1935 = vpack.c.b16 %v1367, %v1365
    %v1936 = vpack.c.b16 %v1368, %v1366
    %v1937 = vpack.c.b16 %v1371, %v1369
    %v1938 = vpack.c.b16 %v1372, %v1370
    %v1939 = vpack.c.b16 %v1375, %v1373
    %v1940 = vpack.c.b16 %v1376, %v1374
    %v1941 = vpack.c.b16 %v1379, %v1377
    %v1942 = vpack.c.b16 %v1380, %v1378
    %v1943 = vpack.c.b16 %v1383, %v1381
    %v1944 = vpack.c.b16 %v1384, %v1382
    %v1945 = vpack.c.b16 %v1387, %v1385
    %v1946 = vpack.c.b16 %v1388, %v1386
    %v1947 = vpack.c.b16 %v1391, %v1389
    %v1948 = vpack.c.b16 %v1392, %v1390
    %v1949 = vpack.c.b16 %v1395, %v1393
    %v1950 = vpack.c.b16 %v1396, %v1394
    %v1951 = vpack.c.b16 %v1399, %v1397
    %v1952 = vpack.c.b16 %v1400, %v1398
    %v1953 = vpack.c.b16 %v1403, %v1401
    %v1954 = vpack.c.b16 %v1404, %v1402
    %v1955 = vpack.c.b16 %v1407, %v1405
    %v1956 = vpack.c.b16 %v1408, %v1406
    %v1957 = vpack.c.b16 %v1411, %v1409
    %v1958 = vpack.c.b16 %v1412, %v1410
    %v1959 = vpack.c.b16 %v1415, %v1413
    %v1960 = vpack.c.b16 %v1416, %v1414
    %v1961 = vpack.c.b16 %v1419, %v1417
    %v1962 = vpack.c.b16 %v1420, %v1418
    %v1963 = vpack.c.b16 %v1423, %v1421
    %v1964 = vpack.c.b16 %v1424, %v1422
    %v1965 = vpack.c.b16 %v1427, %v1425
    %v1966 = vpack.c.b16 %v1428, %v1426
    %v1967 = vpack.c.b16 %v1431, %v1429
    %v1968 = vpack.c.b16 %v1432, %v1430
    %v1969 = vpack.c.b16 %v1435, %v1433
    %v1970 = vpack.c.b16 %v1436, %v1434
    %v1971 = vpack.c.b16 %v1439, %v1437
    %v1972 = vpack.c.b16 %v1440, %v1438
    %v1973 = vpack.c.b16 %v1443, %v1441
    %v1974 = vpack.c.b16 %v1444, %v1442
    %v1975 = vpack.c.b16 %v1447, %v1445
    %v1976 = vpack.c.b16 %v1448, %v1446
    %v1977 = vpack.c.b16 %v1451, %v1449
    %v1978 = vpack.c.b16 %v1452, %v1450
    %v1979 = vpack.c.b16 %v1455, %v1453
    %v1980 = vpack.c.b16 %v1456, %v1454
    %v1981 = vpack.c.b16 %v1459, %v1457
    %v1982 = vpack.c.b16 %v1460, %v1458
    %v1983 = vpack.c.b16 %v1463, %v1461
    %v1984 = vpack.c.b16 %v1464, %v1462
    %v1985 = vpack.c.b16 %v1467, %v1465
    %v1986 = vpack.c.b16 %v1468, %v1466
    %v1987 = vpack.c.b16 %v1471, %v1469
    %v1988 = vpack.c.b16 %v1472, %v1470
    %v1989 = vpack.c.b16 %v1475, %v1473
    %v1990 = vpack.c.b16 %v1476, %v1474
    %v1991 = vpack.c.b16 %v1479, %v1477
    %v1992 = vpack.c.b16 %v1480, %v1478
    %v1993 = vpack.c.b16 %v1483, %v1481
    %v1994 = vpack.c.b16 %v1484, %v1482
    %v1995 = vpack.c.b16 %v1487, %v1485
    %v1996 = vpack.c.b16 %v1488, %v1486
    %v1997 = vpack.c.b16 %v1491, %v1489
    %v1998 = vpack.c.b16 %v1492, %v1490
    %v1999 = vpack.c.b16 %v1495, %v1493
    %v2000 = vpack.c.b16 %v1496, %v1494
    %v2001 = vpack.c.b16 %v1499, %v1497
    %v2002 = vpack.c.b16 %v1500, %v1498
    %v2003 = vpack.c.b16 %v1503, %v1501
    %v2004 = vpack.c.b16 %v1504, %v1502
    %v2005 = vpack.c.b16 %v1507, %v1505
    %v2006 = vpack.c.b16 %v1508, %v1506
    %v2007 = vpack.c.b16 %v1511, %v1509
    %v2008 = vpack.c.b16 %v1512, %v1510
    %v2009 = vpack.c.b16 %v1515, %v1513
    %v2010 = vpack.c.b16 %v1516, %v1514
    %v2011 = vpack.c.b16 %v1519, %v1517
    %v2012 = vpack.c.b16 %v1520, %v1518
    %v2013 = vpack.c.b16 %v1523, %v1521
    %v2014 = vpack.c.b16 %v1524, %v1522
    %v2015 = vpack.c.b16 %v1527, %v1525
    %v2016 = vpack.c.b16 %v1528, %v1526
    %v2017 = vpack.c.b16 %v1531, %v1529
    %v2018 = vpack.c.b16 %v1532, %v1530
    %v2019 = vpack.c.b16 %v1535, %v1533
    %v2020 = vpack.c.b16 %v1536, %v1534
    %v2021 = vpack.c.b16 %v1539, %v1537
    %v2022 = vpack.c.b16 %v1540, %v1538
    %v2023 = vpack.c.b16 %v1543, %v1541
    %v2024 = vpack.c.b16 %v1544, %v1542
    %v2025 = vpack.c.b16 %v1547, %v1545
    %v2026 = vpack.c.b16 %v1548, %v1546
    %v2027 = vpack.c.b16 %v1551, %v1549
    %v2028 = vpack.c.b16 %v1552, %v1550
    %v2029 = vpack.c.b16 %v1555, %v1553
    %v2030 = vpack.c.b16 %v1556, %v1554
    %v2031 = vpack.c.b16 %v1559, %v1557
    %v2032 = vpack.c.b16 %v1560, %v1558
    %v2033 = vpack.c.b16 %v1563, %v1561
    %v2034 = vpack.c.b16 %v1564, %v1562
    %v2035 = vpack.c.b16 %v1567, %v1565
    %v2036 = vpack.c.b16 %v1568, %v1566
    %v2037 = vpack.c.b16 %v1571, %v1569
    %v2038 = vpack.c.b16 %v1572, %v1570
    %v2039 = vpack.c.b16 %v1575, %v1573
    %v2040 = vpack.c.b16 %v1576, %v1574
    %v2041 = vpack.c.b16 %v1579, %v1577
    %v2042 = vpack.c.b16 %v1580, %v1578
    %v2043 = vpack.c.b16 %v1583, %v1581
    %v2044 = vpack.c.b16 %v1584, %v1582
    %v2045 = vpack.c.b16 %v1587, %v1585
    %v2046 = vpack.c.b16 %v1588, %v1586
    %v2047 = vpack.c.b16 %v1591, %v1589
    %v2048 = vpack.c.b16 %v1592, %v1590
    %v2049 = vpack.c.b16 %v1595, %v1593
    %v2050 = vpack.c.b16 %v1596, %v1594
    %v2051 = vpack.c.b16 %v1599, %v1597
    %v2052 = vpack.c.b16 %v1600, %v1598
    %v2053 = vpack.c.b16 %v1603, %v1601
    %v2054 = vpack.c.b16 %v1604, %v1602
    %v2055 = vpack.c.b16 %v1607, %v1605
    %v2056 = vpack.c.b16 %v1608, %v1606
    %v2057 = vpack.c.b16 %v1611, %v1609
    %v2058 = vpack.c.b16 %v1612, %v1610
    %v2059 = vpack.c.b16 %v1615, %v1613
    %v2060 = vpack.c.b16 %v1616, %v1614
    %v2061 = vpack.c.b16 %v1619, %v1617
    %v2062 = vpack.c.b16 %v1620, %v1618
    %v2063 = vpack.c.b16 %v1623, %v1621
    %v2064 = vpack.c.b16 %v1624, %v1622
    %v2065 = vpack.c.b16 %v1627, %v1625
    %v2066 = vpack.c.b16 %v1628, %v1626
    %v2067 = vpack.c.b16 %v1631, %v1629
    %v2068 = vpack.c.b16 %v1632, %v1630
    %v2069 = vpack.c.b16 %v1635, %v1633
    %v2070 = vpack.c.b16 %v1636, %v1634
    %v2071 = vpack.c.b16 %v1639, %v1637
    %v2072 = vpack.c.b16 %v1640, %v1638
    %v2073 = vpack.c.b16 %v1643, %v1641
    %v2074 = vpack.c.b16 %v1644, %v1642
    %v2075 = vpack.c.b16 %v1647, %v1645
    %v2076 = vpack.c.b16 %v1648, %v1646
    %v2077 = vpack.c.b16 %v1651, %v1649
    %v2078 = vpack.c.b16 %v1652, %v1650
    %v2079 = vpack.c.b16 %v1655, %v1653
    %v2080 = vpack.c.b16 %v1656, %v1654
    %v2081 = vpack.c.b16 %v1659, %v1657
    %v2082 = vpack.c.b16 %v1660, %v1658
    %v2083 = vpack.c.b16 %v1663, %v1661
    %v2084 = vpack.c.b16 %v1664, %v1662
    %v2085 = vpack.c.b16 %v1667, %v1665
    %v2086 = vpack.c.b16 %v1668, %v1666
    %v2087 = vpack.c.b16 %v1671, %v1669
    %v2088 = vpack.c.b16 %v1672, %v1670
    %v2089 = vpack.c.b16 %v1675, %v1673
    %v2090 = vpack.c.b16 %v1676, %v1674
    %v2091 = vpack.c.b16 %v1679, %v1677
    %v2092 = vpack.c.b16 %v1680, %v1678
    %v2093 = vpack.c.b16 %v1683, %v1681
    %v2094 = vpack.c.b16 %v1684, %v1682
    %v2095 = vpack.c.b16 %v1687, %v1685
    %v2096 = vpack.c.b16 %v1688, %v1686
    %v2097 = vpack.c.b16 %v1691, %v1689
    %v2098 = vpack.c.b16 %v1692, %v1690
    %v2099 = vpack.c.b16 %v1695, %v1693
    %v2100 = vpack.c.b16 %v1696, %v1694
    %v2101 = vpack.c.b16 %v1699, %v1697
    %v2102 = vpack.c.b16 %v1700, %v1698
    %v2103 = vpack.c.b16 %v1703, %v1701
    %v2104 = vpack.c.b16 %v1704, %v1702
    %v2105 = vpack.c.b16 %v1707, %v1705
    %v2106 = vpack.c.b16 %v1708, %v1706
    %v2107 = vpack.c.b16 %v1711, %v1709
    %v2108 = vpack.c.b16 %v1712, %v1710
    %v2109 = vpack.c.b16 %v1715, %v1713
    %v2110 = vpack.c.b16 %v1716, %v1714
    %v2111 = vpack.c.b16 %v1719, %v1717
    %v2112 = vpack.c.b16 %v1720, %v1718
    %v2113 = vpack.c.b16 %v1723, %v1721
    %v2114 = vpack.c.b16 %v1724, %v1722
    %v2115 = vpack.c.b16 %v1727, %v1725
    %v2116 = vpack.c.b16 %v1728, %v1726
    %v2117 = vpack.c.b16 %v1731, %v1729
    %v2118 = vpack.c.b16 %v1732, %v1730
    %v2119 = vpack.c.b16 %v1735, %v1733
    %v2120 = vpack.c.b16 %v1736, %v1734
    %2505 = vmatprep.subr.bf16.mxu0 %v1752
    %2506 = vmatpush1.bf16.msra.mxu0 %v1751
    %2507 = vmatprep.subr.bf16.mxu0 %v1750
    %2508 = vmatpush1.bf16.msra.mxu0 %v1749
    %2509 = vmatprep.subr.bf16.mxu0 %v1748
    %2510 = vmatpush1.bf16.msra.mxu0 %v1747
    %2511 = vmatprep.subr.bf16.mxu0 %v1746
    %2512 = vmatpush1.bf16.msra.mxu0 %v1745
    %2513 = vmatprep.subr.bf16.mxu0 %v1744
    %2514 = vmatpush1.bf16.msra.mxu0 %v1743
    %2515 = vmatprep.subr.bf16.mxu0 %v1742
    %2516 = vmatpush1.bf16.msra.mxu0 %v1741
    %2517 = vmatprep.subr.bf16.mxu0 %v1740
    %2518 = vmatpush1.bf16.msra.mxu0 %v1739
    %2519 = vmatprep.subr.bf16.mxu0 %v1738
    %2520 = vmatpush1.bf16.msra.mxu0 %v1737
    %2521 = vmatprep.subr.bf16.mxu0 %v1768
    %2522 = vmatpush2.bf16.msra.mxu0 %v1767
    %2523 = vmatprep.subr.bf16.mxu0 %v1766
    %2524 = vmatpush2.bf16.msra.mxu0 %v1765
    %2525 = vmatprep.subr.bf16.mxu0 %v1764
    %2526 = vmatpush2.bf16.msra.mxu0 %v1763
    %2527 = vmatprep.subr.bf16.mxu0 %v1762
    %2528 = vmatpush2.bf16.msra.mxu0 %v1761
    %2529 = vmatprep.subr.bf16.mxu0 %v1760
    %2530 = vmatpush2.bf16.msra.mxu0 %v1759
    %2531 = vmatprep.subr.bf16.mxu0 %v1758
    %2532 = vmatpush2.bf16.msra.mxu0 %v1757
    %2533 = vmatprep.subr.bf16.mxu0 %v1756
    %2534 = vmatpush2.bf16.msra.mxu0 %v1755
    %2535 = vmatprep.subr.bf16.mxu0 %v1754
    %2536 = vmatpush2.bf16.msra.mxu0 %v1753
    %2537 = vmatprep.mubr.bf16.mxu0 %v166
    %2538 = vmatmul.mubr.bf16.gmra.mxu0 %v165
    %v2539 = vpop.f32.mrf.mxu0
    %v2540 = vadd.f32 %v578, %v2539
    %v2541 = vpop.f32.mrf.mxu0
    %v2542 = vadd.f32 %v582, %v2541
    %v2543 = vpop.f32.mrf.mxu0
    %v2544 = vadd.f32 %v578, %v2543
    %v2545 = vpop.f32.mrf.mxu0
    %v2546 = vadd.f32 %v582, %v2545
    %2547 = vdwg.mxu0
    %2548 = vmatprep.subr.bf16.mxu0 %v1784
    %2549 = vmatpush1.bf16.msra.mxu0 %v1783
    %2550 = vmatprep.subr.bf16.mxu0 %v1782
    %2551 = vmatpush1.bf16.msra.mxu0 %v1781
    %2552 = vmatprep.subr.bf16.mxu0 %v1780
    %2553 = vmatpush1.bf16.msra.mxu0 %v1779
    %2554 = vmatprep.subr.bf16.mxu0 %v1778
    %2555 = vmatpush1.bf16.msra.mxu0 %v1777
    %2556 = vmatprep.subr.bf16.mxu0 %v1776
    %2557 = vmatpush1.bf16.msra.mxu0 %v1775
    %2558 = vmatprep.subr.bf16.mxu0 %v1774
    %2559 = vmatpush1.bf16.msra.mxu0 %v1773
    %2560 = vmatprep.subr.bf16.mxu0 %v1772
    %2561 = vmatpush1.bf16.msra.mxu0 %v1771
    %2562 = vmatprep.subr.bf16.mxu0 %v1770
    %2563 = vmatpush1.bf16.msra.mxu0 %v1769
    %2564 = vmatprep.subr.bf16.mxu0 %v1800
    %2565 = vmatpush2.bf16.msra.mxu0 %v1799
    %2566 = vmatprep.subr.bf16.mxu0 %v1798
    %2567 = vmatpush2.bf16.msra.mxu0 %v1797
    %2568 = vmatprep.subr.bf16.mxu0 %v1796
    %2569 = vmatpush2.bf16.msra.mxu0 %v1795
    %2570 = vmatprep.subr.bf16.mxu0 %v1794
    %2571 = vmatpush2.bf16.msra.mxu0 %v1793
    %2572 = vmatprep.subr.bf16.mxu0 %v1792
    %2573 = vmatpush2.bf16.msra.mxu0 %v1791
    %2574 = vmatprep.subr.bf16.mxu0 %v1790
    %2575 = vmatpush2.bf16.msra.mxu0 %v1789
    %2576 = vmatprep.subr.bf16.mxu0 %v1788
    %2577 = vmatpush2.bf16.msra.mxu0 %v1787
    %2578 = vmatprep.subr.bf16.mxu0 %v1786
    %2579 = vmatpush2.bf16.msra.mxu0 %v1785
    %2580 = vmatprep.mubr.bf16.mxu0 %v168
    %2581 = vmatmul.mubr.bf16.gmra.mxu0 %v167
    %v2582 = vpop.f32.mrf.mxu0
    %v2583 = vadd.f32 %v2540, %v2582
    %v2584 = vpop.f32.mrf.mxu0
    %v2585 = vadd.f32 %v2542, %v2584
    %v2586 = vpop.f32.mrf.mxu0
    %v2587 = vadd.f32 %v2544, %v2586
    %v2588 = vpop.f32.mrf.mxu0
    %v2589 = vadd.f32 %v2546, %v2588
    %2590 = vdwg.mxu0
    %2591 = vmatprep.subr.bf16.mxu0 %v1816
    %2592 = vmatpush1.bf16.msra.mxu0 %v1815
    %2593 = vmatprep.subr.bf16.mxu0 %v1814
    %2594 = vmatpush1.bf16.msra.mxu0 %v1813
    %2595 = vmatprep.subr.bf16.mxu0 %v1812
    %2596 = vmatpush1.bf16.msra.mxu0 %v1811
    %2597 = vmatprep.subr.bf16.mxu0 %v1810
    %2598 = vmatpush1.bf16.msra.mxu0 %v1809
    %2599 = vmatprep.subr.bf16.mxu0 %v1808
    %2600 = vmatpush1.bf16.msra.mxu0 %v1807
    %2601 = vmatprep.subr.bf16.mxu0 %v1806
    %2602 = vmatpush1.bf16.msra.mxu0 %v1805
    %2603 = vmatprep.subr.bf16.mxu0 %v1804
    %2604 = vmatpush1.bf16.msra.mxu0 %v1803
    %2605 = vmatprep.subr.bf16.mxu0 %v1802
    %2606 = vmatpush1.bf16.msra.mxu0 %v1801
    %2607 = vmatprep.subr.bf16.mxu0 %v1832
    %2608 = vmatpush2.bf16.msra.mxu0 %v1831
    %2609 = vmatprep.subr.bf16.mxu0 %v1830
    %2610 = vmatpush2.bf16.msra.mxu0 %v1829
    %2611 = vmatprep.subr.bf16.mxu0 %v1828
    %2612 = vmatpush2.bf16.msra.mxu0 %v1827
    %2613 = vmatprep.subr.bf16.mxu0 %v1826
    %2614 = vmatpush2.bf16.msra.mxu0 %v1825
    %2615 = vmatprep.subr.bf16.mxu0 %v1824
    %2616 = vmatpush2.bf16.msra.mxu0 %v1823
    %2617 = vmatprep.subr.bf16.mxu0 %v1822
    %2618 = vmatpush2.bf16.msra.mxu0 %v1821
    %2619 = vmatprep.subr.bf16.mxu0 %v1820
    %2620 = vmatpush2.bf16.msra.mxu0 %v1819
    %2621 = vmatprep.subr.bf16.mxu0 %v1818
    %2622 = vmatpush2.bf16.msra.mxu0 %v1817
    %2623 = vmatprep.mubr.bf16.mxu0 %v170
    %2624 = vmatmul.mubr.bf16.gmra.mxu0 %v169
    %v2625 = vpop.f32.mrf.mxu0
    %v2626 = vadd.f32 %v2583, %v2625
    %v2627 = vpop.f32.mrf.mxu0
    %v2628 = vadd.f32 %v2585, %v2627
    %v2629 = vpop.f32.mrf.mxu0
    %v2630 = vadd.f32 %v2587, %v2629
    %v2631 = vpop.f32.mrf.mxu0
    %v2632 = vadd.f32 %v2589, %v2631
    %2633 = vdwg.mxu0
    %2634 = vmatprep.subr.bf16.mxu0 %v1848
    %2635 = vmatpush1.bf16.msra.mxu0 %v1847
    %2636 = vmatprep.subr.bf16.mxu0 %v1846
    %2637 = vmatpush1.bf16.msra.mxu0 %v1845
    %2638 = vmatprep.subr.bf16.mxu0 %v1844
    %2639 = vmatpush1.bf16.msra.mxu0 %v1843
    %2640 = vmatprep.subr.bf16.mxu0 %v1842
    %2641 = vmatpush1.bf16.msra.mxu0 %v1841
    %2642 = vmatprep.subr.bf16.mxu0 %v1840
    %2643 = vmatpush1.bf16.msra.mxu0 %v1839
    %2644 = vmatprep.subr.bf16.mxu0 %v1838
    %2645 = vmatpush1.bf16.msra.mxu0 %v1837
    %2646 = vmatprep.subr.bf16.mxu0 %v1836
    %2647 = vmatpush1.bf16.msra.mxu0 %v1835
    %2648 = vmatprep.subr.bf16.mxu0 %v1834
    %2649 = vmatpush1.bf16.msra.mxu0 %v1833
    %2650 = vmatprep.subr.bf16.mxu0 %v1864
    %2651 = vmatpush2.bf16.msra.mxu0 %v1863
    %2652 = vmatprep.subr.bf16.mxu0 %v1862
    %2653 = vmatpush2.bf16.msra.mxu0 %v1861
    %2654 = vmatprep.subr.bf16.mxu0 %v1860
    %2655 = vmatpush2.bf16.msra.mxu0 %v1859
    %2656 = vmatprep.subr.bf16.mxu0 %v1858
    %2657 = vmatpush2.bf16.msra.mxu0 %v1857
    %2658 = vmatprep.subr.bf16.mxu0 %v1856
    %2659 = vmatpush2.bf16.msra.mxu0 %v1855
    %2660 = vmatprep.subr.bf16.mxu0 %v1854
    %2661 = vmatpush2.bf16.msra.mxu0 %v1853
    %2662 = vmatprep.subr.bf16.mxu0 %v1852
    %2663 = vmatpush2.bf16.msra.mxu0 %v1851
    %2664 = vmatprep.subr.bf16.mxu0 %v1850
    %2665 = vmatpush2.bf16.msra.mxu0 %v1849
    %2666 = vmatprep.mubr.bf16.mxu0 %v172
    %2667 = vmatmul.mubr.bf16.gmra.mxu0 %v171
    %v2668 = vpop.f32.mrf.mxu0
    %v2669 = vadd.f32 %v2626, %v2668
    %v2670 = vpop.f32.mrf.mxu0
    %v2671 = vadd.f32 %v2628, %v2670
    %v2672 = vpop.f32.mrf.mxu0
    %v2673 = vadd.f32 %v2630, %v2672
    %v2674 = vpop.f32.mrf.mxu0
    %v2675 = vadd.f32 %v2632, %v2674
    %2676 = vdwg.mxu0
    %2677 = vmatprep.subr.bf16.mxu0 %v1880
    %2678 = vmatpush1.bf16.msra.mxu0 %v1879
    %2679 = vmatprep.subr.bf16.mxu0 %v1878
    %2680 = vmatpush1.bf16.msra.mxu0 %v1877
    %2681 = vmatprep.subr.bf16.mxu0 %v1876
    %2682 = vmatpush1.bf16.msra.mxu0 %v1875
    %2683 = vmatprep.subr.bf16.mxu0 %v1874
    %2684 = vmatpush1.bf16.msra.mxu0 %v1873
    %2685 = vmatprep.subr.bf16.mxu0 %v1872
    %2686 = vmatpush1.bf16.msra.mxu0 %v1871
    %2687 = vmatprep.subr.bf16.mxu0 %v1870
    %2688 = vmatpush1.bf16.msra.mxu0 %v1869
    %2689 = vmatprep.subr.bf16.mxu0 %v1868
    %2690 = vmatpush1.bf16.msra.mxu0 %v1867
    %2691 = vmatprep.subr.bf16.mxu0 %v1866
    %2692 = vmatpush1.bf16.msra.mxu0 %v1865
    %2693 = vmatprep.subr.bf16.mxu0 %v1896
    %2694 = vmatpush2.bf16.msra.mxu0 %v1895
    %2695 = vmatprep.subr.bf16.mxu0 %v1894
    %2696 = vmatpush2.bf16.msra.mxu0 %v1893
    %2697 = vmatprep.subr.bf16.mxu0 %v1892
    %2698 = vmatpush2.bf16.msra.mxu0 %v1891
    %2699 = vmatprep.subr.bf16.mxu0 %v1890
    %2700 = vmatpush2.bf16.msra.mxu0 %v1889
    %2701 = vmatprep.subr.bf16.mxu0 %v1888
    %2702 = vmatpush2.bf16.msra.mxu0 %v1887
    %2703 = vmatprep.subr.bf16.mxu0 %v1886
    %2704 = vmatpush2.bf16.msra.mxu0 %v1885
    %2705 = vmatprep.subr.bf16.mxu0 %v1884
    %2706 = vmatpush2.bf16.msra.mxu0 %v1883
    %2707 = vmatprep.subr.bf16.mxu0 %v1882
    %2708 = vmatpush2.bf16.msra.mxu0 %v1881
    %2709 = vmatprep.mubr.bf16.mxu0 %v174
    %2710 = vmatmul.mubr.bf16.gmra.mxu0 %v173
    %v2711 = vpop.f32.mrf.mxu0
    %v2712 = vadd.f32 %v2669, %v2711
    %v2713 = vpop.f32.mrf.mxu0
    %v2714 = vadd.f32 %v2671, %v2713
    %v2715 = vpop.f32.mrf.mxu0
    %v2716 = vadd.f32 %v2673, %v2715
    %v2717 = vpop.f32.mrf.mxu0
    %v2718 = vadd.f32 %v2675, %v2717
    %2719 = vdwg.mxu0
    %2720 = vmatprep.subr.bf16.mxu0 %v1912
    %2721 = vmatpush1.bf16.msra.mxu0 %v1911
    %2722 = vmatprep.subr.bf16.mxu0 %v1910
    %2723 = vmatpush1.bf16.msra.mxu0 %v1909
    %2724 = vmatprep.subr.bf16.mxu0 %v1908
    %2725 = vmatpush1.bf16.msra.mxu0 %v1907
    %2726 = vmatprep.subr.bf16.mxu0 %v1906
    %2727 = vmatpush1.bf16.msra.mxu0 %v1905
    %2728 = vmatprep.subr.bf16.mxu0 %v1904
    %2729 = vmatpush1.bf16.msra.mxu0 %v1903
    %2730 = vmatprep.subr.bf16.mxu0 %v1902
    %2731 = vmatpush1.bf16.msra.mxu0 %v1901
    %2732 = vmatprep.subr.bf16.mxu0 %v1900
    %2733 = vmatpush1.bf16.msra.mxu0 %v1899
    %2734 = vmatprep.subr.bf16.mxu0 %v1898
    %2735 = vmatpush1.bf16.msra.mxu0 %v1897
    %2736 = vmatprep.subr.bf16.mxu0 %v1928
    %2737 = vmatpush2.bf16.msra.mxu0 %v1927
    %2738 = vmatprep.subr.bf16.mxu0 %v1926
    %2739 = vmatpush2.bf16.msra.mxu0 %v1925
    %2740 = vmatprep.subr.bf16.mxu0 %v1924
    %2741 = vmatpush2.bf16.msra.mxu0 %v1923
    %2742 = vmatprep.subr.bf16.mxu0 %v1922
    %2743 = vmatpush2.bf16.msra.mxu0 %v1921
    %2744 = vmatprep.subr.bf16.mxu0 %v1920
    %2745 = vmatpush2.bf16.msra.mxu0 %v1919
    %2746 = vmatprep.subr.bf16.mxu0 %v1918
    %2747 = vmatpush2.bf16.msra.mxu0 %v1917
    %2748 = vmatprep.subr.bf16.mxu0 %v1916
    %2749 = vmatpush2.bf16.msra.mxu0 %v1915
    %2750 = vmatprep.subr.bf16.mxu0 %v1914
    %2751 = vmatpush2.bf16.msra.mxu0 %v1913
    %2752 = vmatprep.mubr.bf16.mxu0 %v176
    %2753 = vmatmul.mubr.bf16.gmra.mxu0 %v175
    %v2754 = vpop.f32.mrf.mxu0
    %v2755 = vadd.f32 %v2712, %v2754
    %v2756 = vpop.f32.mrf.mxu0
    %v2757 = vadd.f32 %v2714, %v2756
    %v2758 = vpop.f32.mrf.mxu0
    %v2759 = vadd.f32 %v2716, %v2758
    %v2760 = vpop.f32.mrf.mxu0
    %v2761 = vadd.f32 %v2718, %v2760
    %2762 = vdwg.mxu0
    %2763 = vmatprep.subr.bf16.mxu0 %v1944
    %2764 = vmatpush1.bf16.msra.mxu0 %v1943
    %2765 = vmatprep.subr.bf16.mxu0 %v1942
    %2766 = vmatpush1.bf16.msra.mxu0 %v1941
    %2767 = vmatprep.subr.bf16.mxu0 %v1940
    %2768 = vmatpush1.bf16.msra.mxu0 %v1939
    %2769 = vmatprep.subr.bf16.mxu0 %v1938
    %2770 = vmatpush1.bf16.msra.mxu0 %v1937
    %2771 = vmatprep.subr.bf16.mxu0 %v1936
    %2772 = vmatpush1.bf16.msra.mxu0 %v1935
    %2773 = vmatprep.subr.bf16.mxu0 %v1934
    %2774 = vmatpush1.bf16.msra.mxu0 %v1933
    %2775 = vmatprep.subr.bf16.mxu0 %v1932
    %2776 = vmatpush1.bf16.msra.mxu0 %v1931
    %2777 = vmatprep.subr.bf16.mxu0 %v1930
    %2778 = vmatpush1.bf16.msra.mxu0 %v1929
    %2779 = vmatprep.subr.bf16.mxu0 %v1960
    %2780 = vmatpush2.bf16.msra.mxu0 %v1959
    %2781 = vmatprep.subr.bf16.mxu0 %v1958
    %2782 = vmatpush2.bf16.msra.mxu0 %v1957
    %2783 = vmatprep.subr.bf16.mxu0 %v1956
    %2784 = vmatpush2.bf16.msra.mxu0 %v1955
    %2785 = vmatprep.subr.bf16.mxu0 %v1954
    %2786 = vmatpush2.bf16.msra.mxu0 %v1953
    %2787 = vmatprep.subr.bf16.mxu0 %v1952
    %2788 = vmatpush2.bf16.msra.mxu0 %v1951
    %2789 = vmatprep.subr.bf16.mxu0 %v1950
    %2790 = vmatpush2.bf16.msra.mxu0 %v1949
    %2791 = vmatprep.subr.bf16.mxu0 %v1948
    %2792 = vmatpush2.bf16.msra.mxu0 %v1947
    %2793 = vmatprep.subr.bf16.mxu0 %v1946
    %2794 = vmatpush2.bf16.msra.mxu0 %v1945
    %2795 = vmatprep.mubr.bf16.mxu0 %v178
    %2796 = vmatmul.mubr.bf16.gmra.mxu0 %v177
    %v2797 = vpop.f32.mrf.mxu0
    %v2798 = vadd.f32 %v2755, %v2797
    %v2799 = vpop.f32.mrf.mxu0
    %v2800 = vadd.f32 %v2757, %v2799
    %v2801 = vpop.f32.mrf.mxu0
    %v2802 = vadd.f32 %v2759, %v2801
    %v2803 = vpop.f32.mrf.mxu0
    %v2804 = vadd.f32 %v2761, %v2803
    %2805 = vdwg.mxu0
    %2806 = vmatprep.subr.bf16.mxu0 %v1976
    %2807 = vmatpush1.bf16.msra.mxu0 %v1975
    %2808 = vmatprep.subr.bf16.mxu0 %v1974
    %2809 = vmatpush1.bf16.msra.mxu0 %v1973
    %2810 = vmatprep.subr.bf16.mxu0 %v1972
    %2811 = vmatpush1.bf16.msra.mxu0 %v1971
    %2812 = vmatprep.subr.bf16.mxu0 %v1970
    %2813 = vmatpush1.bf16.msra.mxu0 %v1969
    %2814 = vmatprep.subr.bf16.mxu0 %v1968
    %2815 = vmatpush1.bf16.msra.mxu0 %v1967
    %2816 = vmatprep.subr.bf16.mxu0 %v1966
    %2817 = vmatpush1.bf16.msra.mxu0 %v1965
    %2818 = vmatprep.subr.bf16.mxu0 %v1964
    %2819 = vmatpush1.bf16.msra.mxu0 %v1963
    %2820 = vmatprep.subr.bf16.mxu0 %v1962
    %2821 = vmatpush1.bf16.msra.mxu0 %v1961
    %2822 = vmatprep.subr.bf16.mxu0 %v1992
    %2823 = vmatpush2.bf16.msra.mxu0 %v1991
    %2824 = vmatprep.subr.bf16.mxu0 %v1990
    %2825 = vmatpush2.bf16.msra.mxu0 %v1989
    %2826 = vmatprep.subr.bf16.mxu0 %v1988
    %2827 = vmatpush2.bf16.msra.mxu0 %v1987
    %2828 = vmatprep.subr.bf16.mxu0 %v1986
    %2829 = vmatpush2.bf16.msra.mxu0 %v1985
    %2830 = vmatprep.subr.bf16.mxu0 %v1984
    %2831 = vmatpush2.bf16.msra.mxu0 %v1983
    %2832 = vmatprep.subr.bf16.mxu0 %v1982
    %2833 = vmatpush2.bf16.msra.mxu0 %v1981
    %2834 = vmatprep.subr.bf16.mxu0 %v1980
    %2835 = vmatpush2.bf16.msra.mxu0 %v1979
    %2836 = vmatprep.subr.bf16.mxu0 %v1978
    %2837 = vmatpush2.bf16.msra.mxu0 %v1977
    %2838 = vmatprep.mubr.bf16.mxu0 %v180
    %2839 = vmatmul.mubr.bf16.gmra.mxu0 %v179
    %v2840 = vpop.f32.mrf.mxu0
    %v2841 = vadd.f32 %v2798, %v2840
    %v2842 = vpop.f32.mrf.mxu0
    %v2843 = vadd.f32 %v2800, %v2842
    %v2844 = vpop.f32.mrf.mxu0
    %v2845 = vadd.f32 %v2802, %v2844
    %v2846 = vpop.f32.mrf.mxu0
    %v2847 = vadd.f32 %v2804, %v2846
    %2848 = vdwg.mxu0
    %2849 = vmatprep.subr.bf16.mxu0 %v2008
    %2850 = vmatpush1.bf16.msra.mxu0 %v2007
    %2851 = vmatprep.subr.bf16.mxu0 %v2006
    %2852 = vmatpush1.bf16.msra.mxu0 %v2005
    %2853 = vmatprep.subr.bf16.mxu0 %v2004
    %2854 = vmatpush1.bf16.msra.mxu0 %v2003
    %2855 = vmatprep.subr.bf16.mxu0 %v2002
    %2856 = vmatpush1.bf16.msra.mxu0 %v2001
    %2857 = vmatprep.subr.bf16.mxu0 %v2000
    %2858 = vmatpush1.bf16.msra.mxu0 %v1999
    %2859 = vmatprep.subr.bf16.mxu0 %v1998
    %2860 = vmatpush1.bf16.msra.mxu0 %v1997
    %2861 = vmatprep.subr.bf16.mxu0 %v1996
    %2862 = vmatpush1.bf16.msra.mxu0 %v1995
    %2863 = vmatprep.subr.bf16.mxu0 %v1994
    %2864 = vmatpush1.bf16.msra.mxu0 %v1993
    %2865 = vmatprep.subr.bf16.mxu0 %v2024
    %2866 = vmatpush2.bf16.msra.mxu0 %v2023
    %2867 = vmatprep.subr.bf16.mxu0 %v2022
    %2868 = vmatpush2.bf16.msra.mxu0 %v2021
    %2869 = vmatprep.subr.bf16.mxu0 %v2020
    %2870 = vmatpush2.bf16.msra.mxu0 %v2019
    %2871 = vmatprep.subr.bf16.mxu0 %v2018
    %2872 = vmatpush2.bf16.msra.mxu0 %v2017
    %2873 = vmatprep.subr.bf16.mxu0 %v2016
    %2874 = vmatpush2.bf16.msra.mxu0 %v2015
    %2875 = vmatprep.subr.bf16.mxu0 %v2014
    %2876 = vmatpush2.bf16.msra.mxu0 %v2013
    %2877 = vmatprep.subr.bf16.mxu0 %v2012
    %2878 = vmatpush2.bf16.msra.mxu0 %v2011
    %2879 = vmatprep.subr.bf16.mxu0 %v2010
    %2880 = vmatpush2.bf16.msra.mxu0 %v2009
    %2881 = vmatprep.mubr.bf16.mxu0 %v182
    %2882 = vmatmul.mubr.bf16.gmra.mxu0 %v181
    %v2883 = vpop.f32.mrf.mxu0
    %v2884 = vadd.f32 %v2841, %v2883
    %v2885 = vpop.f32.mrf.mxu0
    %v2886 = vadd.f32 %v2843, %v2885
    %v2887 = vpop.f32.mrf.mxu0
    %v2888 = vadd.f32 %v2845, %v2887
    %v2889 = vpop.f32.mrf.mxu0
    %v2890 = vadd.f32 %v2847, %v2889
    %2891 = vdwg.mxu0
    %2892 = vmatprep.subr.bf16.mxu0 %v2040
    %2893 = vmatpush1.bf16.msra.mxu0 %v2039
    %2894 = vmatprep.subr.bf16.mxu0 %v2038
    %2895 = vmatpush1.bf16.msra.mxu0 %v2037
    %2896 = vmatprep.subr.bf16.mxu0 %v2036
    %2897 = vmatpush1.bf16.msra.mxu0 %v2035
    %2898 = vmatprep.subr.bf16.mxu0 %v2034
    %2899 = vmatpush1.bf16.msra.mxu0 %v2033
    %2900 = vmatprep.subr.bf16.mxu0 %v2032
    %2901 = vmatpush1.bf16.msra.mxu0 %v2031
    %2902 = vmatprep.subr.bf16.mxu0 %v2030
    %2903 = vmatpush1.bf16.msra.mxu0 %v2029
    %2904 = vmatprep.subr.bf16.mxu0 %v2028
    %2905 = vmatpush1.bf16.msra.mxu0 %v2027
    %2906 = vmatprep.subr.bf16.mxu0 %v2026
    %2907 = vmatpush1.bf16.msra.mxu0 %v2025
    %2908 = vmatprep.subr.bf16.mxu0 %v2056
    %2909 = vmatpush2.bf16.msra.mxu0 %v2055
    %2910 = vmatprep.subr.bf16.mxu0 %v2054
    %2911 = vmatpush2.bf16.msra.mxu0 %v2053
    %2912 = vmatprep.subr.bf16.mxu0 %v2052
    %2913 = vmatpush2.bf16.msra.mxu0 %v2051
    %2914 = vmatprep.subr.bf16.mxu0 %v2050
    %2915 = vmatpush2.bf16.msra.mxu0 %v2049
    %2916 = vmatprep.subr.bf16.mxu0 %v2048
    %2917 = vmatpush2.bf16.msra.mxu0 %v2047
    %2918 = vmatprep.subr.bf16.mxu0 %v2046
    %2919 = vmatpush2.bf16.msra.mxu0 %v2045
    %2920 = vmatprep.subr.bf16.mxu0 %v2044
    %2921 = vmatpush2.bf16.msra.mxu0 %v2043
    %2922 = vmatprep.subr.bf16.mxu0 %v2042
    %2923 = vmatpush2.bf16.msra.mxu0 %v2041
    %2924 = vmatprep.mubr.bf16.mxu0 %v184
    %2925 = vmatmul.mubr.bf16.gmra.mxu0 %v183
    %v2926 = vpop.f32.mrf.mxu0
    %v2927 = vadd.f32 %v2884, %v2926
    %v2928 = vpop.f32.mrf.mxu0
    %v2929 = vadd.f32 %v2886, %v2928
    %v2930 = vpop.f32.mrf.mxu0
    %v2931 = vadd.f32 %v2888, %v2930
    %v2932 = vpop.f32.mrf.mxu0
    %v2933 = vadd.f32 %v2890, %v2932
    %2934 = vdwg.mxu0
    %2935 = vmatprep.subr.bf16.mxu0 %v2072
    %2936 = vmatpush1.bf16.msra.mxu0 %v2071
    %2937 = vmatprep.subr.bf16.mxu0 %v2070
    %2938 = vmatpush1.bf16.msra.mxu0 %v2069
    %2939 = vmatprep.subr.bf16.mxu0 %v2068
    %2940 = vmatpush1.bf16.msra.mxu0 %v2067
    %2941 = vmatprep.subr.bf16.mxu0 %v2066
    %2942 = vmatpush1.bf16.msra.mxu0 %v2065
    %2943 = vmatprep.subr.bf16.mxu0 %v2064
    %2944 = vmatpush1.bf16.msra.mxu0 %v2063
    %2945 = vmatprep.subr.bf16.mxu0 %v2062
    %2946 = vmatpush1.bf16.msra.mxu0 %v2061
    %2947 = vmatprep.subr.bf16.mxu0 %v2060
    %2948 = vmatpush1.bf16.msra.mxu0 %v2059
    %2949 = vmatprep.subr.bf16.mxu0 %v2058
    %2950 = vmatpush1.bf16.msra.mxu0 %v2057
    %2951 = vmatprep.subr.bf16.mxu0 %v2088
    %2952 = vmatpush2.bf16.msra.mxu0 %v2087
    %2953 = vmatprep.subr.bf16.mxu0 %v2086
    %2954 = vmatpush2.bf16.msra.mxu0 %v2085
    %2955 = vmatprep.subr.bf16.mxu0 %v2084
    %2956 = vmatpush2.bf16.msra.mxu0 %v2083
    %2957 = vmatprep.subr.bf16.mxu0 %v2082
    %2958 = vmatpush2.bf16.msra.mxu0 %v2081
    %2959 = vmatprep.subr.bf16.mxu0 %v2080
    %2960 = vmatpush2.bf16.msra.mxu0 %v2079
    %2961 = vmatprep.subr.bf16.mxu0 %v2078
    %2962 = vmatpush2.bf16.msra.mxu0 %v2077
    %2963 = vmatprep.subr.bf16.mxu0 %v2076
    %2964 = vmatpush2.bf16.msra.mxu0 %v2075
    %2965 = vmatprep.subr.bf16.mxu0 %v2074
    %2966 = vmatpush2.bf16.msra.mxu0 %v2073
    %2967 = vmatprep.mubr.bf16.mxu0 %v186
    %2968 = vmatmul.mubr.bf16.gmra.mxu0 %v185
    %v2969 = vpop.f32.mrf.mxu0
    %v2970 = vadd.f32 %v2927, %v2969
    %v2971 = vpop.f32.mrf.mxu0
    %v2972 = vadd.f32 %v2929, %v2971
    %v2973 = vpop.f32.mrf.mxu0
    %v2974 = vadd.f32 %v2931, %v2973
    %v2975 = vpop.f32.mrf.mxu0
    %v2976 = vadd.f32 %v2933, %v2975
    %2977 = vdwg.mxu0
    %2978 = vmatprep.subr.bf16.mxu0 %v2104
    %2979 = vmatpush1.bf16.msra.mxu0 %v2103
    %2980 = vmatprep.subr.bf16.mxu0 %v2102
    %2981 = vmatpush1.bf16.msra.mxu0 %v2101
    %2982 = vmatprep.subr.bf16.mxu0 %v2100
    %2983 = vmatpush1.bf16.msra.mxu0 %v2099
    %2984 = vmatprep.subr.bf16.mxu0 %v2098
    %2985 = vmatpush1.bf16.msra.mxu0 %v2097
    %2986 = vmatprep.subr.bf16.mxu0 %v2096
    %2987 = vmatpush1.bf16.msra.mxu0 %v2095
    %2988 = vmatprep.subr.bf16.mxu0 %v2094
    %2989 = vmatpush1.bf16.msra.mxu0 %v2093
    %2990 = vmatprep.subr.bf16.mxu0 %v2092
    %2991 = vmatpush1.bf16.msra.mxu0 %v2091
    %2992 = vmatprep.subr.bf16.mxu0 %v2090
    %2993 = vmatpush1.bf16.msra.mxu0 %v2089
    %2994 = vmatprep.subr.bf16.mxu0 %v2120
    %2995 = vmatpush2.bf16.msra.mxu0 %v2119
    %2996 = vmatprep.subr.bf16.mxu0 %v2118
    %2997 = vmatpush2.bf16.msra.mxu0 %v2117
    %2998 = vmatprep.subr.bf16.mxu0 %v2116
    %2999 = vmatpush2.bf16.msra.mxu0 %v2115
    %3000 = vmatprep.subr.bf16.mxu0 %v2114
    %3001 = vmatpush2.bf16.msra.mxu0 %v2113
    %3002 = vmatprep.subr.bf16.mxu0 %v2112
    %3003 = vmatpush2.bf16.msra.mxu0 %v2111
    %3004 = vmatprep.subr.bf16.mxu0 %v2110
    %3005 = vmatpush2.bf16.msra.mxu0 %v2109
    %3006 = vmatprep.subr.bf16.mxu0 %v2108
    %3007 = vmatpush2.bf16.msra.mxu0 %v2107
    %3008 = vmatprep.subr.bf16.mxu0 %v2106
    %3009 = vmatpush2.bf16.msra.mxu0 %v2105
    %3010 = vmatprep.mubr.bf16.mxu0 %v188
    %3011 = vmatmul.mubr.bf16.gmra.mxu0 %v187
    %v3012 = vpop.f32.mrf.mxu0
    %v3013 = vadd.f32 %v2970, %v3012
    %v3014 = vpop.f32.mrf.mxu0
    %v3015 = vadd.f32 %v2972, %v3014
    %v3016 = vpop.f32.mrf.mxu0
    %v3017 = vadd.f32 %v2974, %v3016
    %v3018 = vpop.f32.mrf.mxu0
    %v3019 = vadd.f32 %v2976, %v3018
    %3020 = vdwg.mxu0
    %v3021 = vmax.f32 %v3013, 0.0
    %v3022 = vmax.f32 %v3015, 0.0
    %v3023 = vmax.f32 %v3017, 0.0
    %v3024 = vmax.f32 %v3019, 0.0
    %v3025 = vpack.c.bf16 %v3023, %v3021
    %v3026 = vpack.c.bf16 %v3024, %v3022
    %v3029 = vunpack.c.l.b16 %v3025
    %v3030 = vunpack.c.l.b16 %v3026
    %v3031 = vunpack.c.h.b16 %v3025
    %v3032 = vunpack.c.h.b16 %v3026
    %v3033 = vpack.c.b16 %v3030, %v3029
    %v3034 = vpack.c.b16 %v3032, %v3031
    %3037 = vst [vmem:[#allocation2] sm:$0xff] %v3033
    %3038 = vst [vmem:[#allocation2 + $0x8] sm:$0xff] %v3034
    %v3039 = vld [vmem:[#allocation2] sm:$0xff]
    %v3040 = vld [vmem:[#allocation2 + $0x8] sm:$0xff]
    %v3041 = vld [vmem:[#allocation10] sm:$0xff]
    %v3042 = vld [vmem:[#allocation10 + $0x8] sm:$0xff]
    %v3043 = vld [vmem:[#allocation10 + $0x10] sm:$0xff]
    %v3044 = vld [vmem:[#allocation10 + $0x18] sm:$0xff]
    %v3045 = vld [vmem:[#allocation10 + $0x20] sm:$0xff]
    %v3046 = vld [vmem:[#allocation10 + $0x28] sm:$0xff]
    %v3047 = vld [vmem:[#allocation10 + $0x30] sm:$0xff]
    %v3048 = vld [vmem:[#allocation10 + $0x38] sm:$0xff]
    %v3049 = vld [vmem:[#allocation10 + $0x40] sm:$0xff]
    %v3050 = vld [vmem:[#allocation10 + $0x48] sm:$0xff]
    %v3051 = vld [vmem:[#allocation10 + $0x50] sm:$0xff]
    %v3052 = vld [vmem:[#allocation10 + $0x58] sm:$0xff]
    %v3053 = vld [vmem:[#allocation10 + $0x60] sm:$0xff]
    %v3054 = vld [vmem:[#allocation10 + $0x68] sm:$0xff]
    %v3055 = vld [vmem:[#allocation10 + $0x70] sm:$0xff]
    %v3056 = vld [vmem:[#allocation10 + $0x78] sm:$0xff]
    %v3057 = vld [vmem:[#allocation10 + $0x80] sm:$0xff]
    %v3058 = vld [vmem:[#allocation10 + $0x88] sm:$0xff]
    %v3059 = vld [vmem:[#allocation10 + $0x90] sm:$0xff]
    %v3060 = vld [vmem:[#allocation10 + $0x98] sm:$0xff]
    %v3061 = vld [vmem:[#allocation10 + $0xa0] sm:$0xff]
    %v3062 = vld [vmem:[#allocation10 + $0xa8] sm:$0xff]
    %v3063 = vld [vmem:[#allocation10 + $0xb0] sm:$0xff]
    %v3064 = vld [vmem:[#allocation10 + $0xb8] sm:$0xff]
    %v3065 = vld [vmem:[#allocation10 + $0xc0] sm:$0xff]
    %v3066 = vld [vmem:[#allocation10 + $0xc8] sm:$0xff]
    %v3067 = vld [vmem:[#allocation10 + $0xd0] sm:$0xff]
    %v3068 = vld [vmem:[#allocation10 + $0xd8] sm:$0xff]
    %v3069 = vld [vmem:[#allocation10 + $0xe0] sm:$0xff]
    %v3070 = vld [vmem:[#allocation10 + $0xe8] sm:$0xff]
    %v3071 = vld [vmem:[#allocation10 + $0xf0] sm:$0xff]
    %v3072 = vld [vmem:[#allocation10 + $0xf8] sm:$0xff]
    %v3073 = vld [vmem:[#allocation12] sm:$0x3]
    %v3075 = vlaneseq
    %v3076 = vshrl.u32 %v3075, 7
    %v3077 = vsub.s32 0, %v3076
    %v3078 = vrot.slane %v3073, %v3077
    %v3079 = vlaneseq
    %v3080 = vshrl.u32 %v3079, 7
    %v3081 = vsub.s32 1, %v3080
    %v3082 = vrot.slane %v3073, %v3081
    %v3087 = vunpack.c.l.b16 %v3039
    %v3088 = vunpack.c.h.b16 %v3039
    %v3089 = vunpack.c.l.b16 %v3040
    %v3090 = vunpack.c.h.b16 %v3040
    %v3091 = vpack.c.b16 %v3089, %v3087
    %v3092 = vpack.c.b16 %v3090, %v3088
    %v3127 = vunpack.c.l.b16 %v3041
    %v3128 = vunpack.c.h.b16 %v3041
    %v3129 = vunpack.c.l.b16 %v3042
    %v3130 = vunpack.c.h.b16 %v3042
    %v3131 = vunpack.c.l.b16 %v3043
    %v3132 = vunpack.c.h.b16 %v3043
    %v3133 = vunpack.c.l.b16 %v3044
    %v3134 = vunpack.c.h.b16 %v3044
    %v3135 = vunpack.c.l.b16 %v3045
    %v3136 = vunpack.c.h.b16 %v3045
    %v3137 = vunpack.c.l.b16 %v3046
    %v3138 = vunpack.c.h.b16 %v3046
    %v3139 = vunpack.c.l.b16 %v3047
    %v3140 = vunpack.c.h.b16 %v3047
    %v3141 = vunpack.c.l.b16 %v3048
    %v3142 = vunpack.c.h.b16 %v3048
    %v3143 = vunpack.c.l.b16 %v3049
    %v3144 = vunpack.c.h.b16 %v3049
    %v3145 = vunpack.c.l.b16 %v3050
    %v3146 = vunpack.c.h.b16 %v3050
    %v3147 = vunpack.c.l.b16 %v3051
    %v3148 = vunpack.c.h.b16 %v3051
    %v3149 = vunpack.c.l.b16 %v3052
    %v3150 = vunpack.c.h.b16 %v3052
    %v3151 = vunpack.c.l.b16 %v3053
    %v3152 = vunpack.c.h.b16 %v3053
    %v3153 = vunpack.c.l.b16 %v3054
    %v3154 = vunpack.c.h.b16 %v3054
    %v3155 = vunpack.c.l.b16 %v3055
    %v3156 = vunpack.c.h.b16 %v3055
    %v3157 = vunpack.c.l.b16 %v3056
    %v3158 = vunpack.c.h.b16 %v3056
    %v3159 = vunpack.c.l.b16 %v3057
    %v3160 = vunpack.c.h.b16 %v3057
    %v3161 = vunpack.c.l.b16 %v3058
    %v3162 = vunpack.c.h.b16 %v3058
    %v3163 = vunpack.c.l.b16 %v3059
    %v3164 = vunpack.c.h.b16 %v3059
    %v3165 = vunpack.c.l.b16 %v3060
    %v3166 = vunpack.c.h.b16 %v3060
    %v3167 = vunpack.c.l.b16 %v3061
    %v3168 = vunpack.c.h.b16 %v3061
    %v3169 = vunpack.c.l.b16 %v3062
    %v3170 = vunpack.c.h.b16 %v3062
    %v3171 = vunpack.c.l.b16 %v3063
    %v3172 = vunpack.c.h.b16 %v3063
    %v3173 = vunpack.c.l.b16 %v3064
    %v3174 = vunpack.c.h.b16 %v3064
    %v3175 = vunpack.c.l.b16 %v3065
    %v3176 = vunpack.c.h.b16 %v3065
    %v3177 = vunpack.c.l.b16 %v3066
    %v3178 = vunpack.c.h.b16 %v3066
    %v3179 = vunpack.c.l.b16 %v3067
    %v3180 = vunpack.c.h.b16 %v3067
    %v3181 = vunpack.c.l.b16 %v3068
    %v3182 = vunpack.c.h.b16 %v3068
    %v3183 = vunpack.c.l.b16 %v3069
    %v3184 = vunpack.c.h.b16 %v3069
    %v3185 = vunpack.c.l.b16 %v3070
    %v3186 = vunpack.c.h.b16 %v3070
    %v3187 = vunpack.c.l.b16 %v3071
    %v3188 = vunpack.c.h.b16 %v3071
    %v3189 = vunpack.c.l.b16 %v3072
    %v3190 = vunpack.c.h.b16 %v3072
    %v3191 = vpack.c.b16 %v3129, %v3127
    %v3192 = vpack.c.b16 %v3130, %v3128
    %v3193 = vpack.c.b16 %v3133, %v3131
    %v3194 = vpack.c.b16 %v3134, %v3132
    %v3195 = vpack.c.b16 %v3137, %v3135
    %v3196 = vpack.c.b16 %v3138, %v3136
    %v3197 = vpack.c.b16 %v3141, %v3139
    %v3198 = vpack.c.b16 %v3142, %v3140
    %v3199 = vpack.c.b16 %v3145, %v3143
    %v3200 = vpack.c.b16 %v3146, %v3144
    %v3201 = vpack.c.b16 %v3149, %v3147
    %v3202 = vpack.c.b16 %v3150, %v3148
    %v3203 = vpack.c.b16 %v3153, %v3151
    %v3204 = vpack.c.b16 %v3154, %v3152
    %v3205 = vpack.c.b16 %v3157, %v3155
    %v3206 = vpack.c.b16 %v3158, %v3156
    %v3207 = vpack.c.b16 %v3161, %v3159
    %v3208 = vpack.c.b16 %v3162, %v3160
    %v3209 = vpack.c.b16 %v3165, %v3163
    %v3210 = vpack.c.b16 %v3166, %v3164
    %v3211 = vpack.c.b16 %v3169, %v3167
    %v3212 = vpack.c.b16 %v3170, %v3168
    %v3213 = vpack.c.b16 %v3173, %v3171
    %v3214 = vpack.c.b16 %v3174, %v3172
    %v3215 = vpack.c.b16 %v3177, %v3175
    %v3216 = vpack.c.b16 %v3178, %v3176
    %v3217 = vpack.c.b16 %v3181, %v3179
    %v3218 = vpack.c.b16 %v3182, %v3180
    %v3219 = vpack.c.b16 %v3185, %v3183
    %v3220 = vpack.c.b16 %v3186, %v3184
    %v3221 = vpack.c.b16 %v3189, %v3187
    %v3222 = vpack.c.b16 %v3190, %v3188
    %3255 = vmatprep.subr.bf16.mxu0 %v3206
    %3256 = vmatpush1.bf16.msra.mxu0 %v3205
    %3257 = vmatprep.subr.bf16.mxu0 %v3204
    %3258 = vmatpush1.bf16.msra.mxu0 %v3203
    %3259 = vmatprep.subr.bf16.mxu0 %v3202
    %3260 = vmatpush1.bf16.msra.mxu0 %v3201
    %3261 = vmatprep.subr.bf16.mxu0 %v3200
    %3262 = vmatpush1.bf16.msra.mxu0 %v3199
    %3263 = vmatprep.subr.bf16.mxu0 %v3198
    %3264 = vmatpush1.bf16.msra.mxu0 %v3197
    %3265 = vmatprep.subr.bf16.mxu0 %v3196
    %3266 = vmatpush1.bf16.msra.mxu0 %v3195
    %3267 = vmatprep.subr.bf16.mxu0 %v3194
    %3268 = vmatpush1.bf16.msra.mxu0 %v3193
    %3269 = vmatprep.subr.bf16.mxu0 %v3192
    %3270 = vmatpush1.bf16.msra.mxu0 %v3191
    %3271 = vmatprep.subr.bf16.mxu0 %v3222
    %3272 = vmatpush2.bf16.msra.mxu0 %v3221
    %3273 = vmatprep.subr.bf16.mxu0 %v3220
    %3274 = vmatpush2.bf16.msra.mxu0 %v3219
    %3275 = vmatprep.subr.bf16.mxu0 %v3218
    %3276 = vmatpush2.bf16.msra.mxu0 %v3217
    %3277 = vmatprep.subr.bf16.mxu0 %v3216
    %3278 = vmatpush2.bf16.msra.mxu0 %v3215
    %3279 = vmatprep.subr.bf16.mxu0 %v3214
    %3280 = vmatpush2.bf16.msra.mxu0 %v3213
    %3281 = vmatprep.subr.bf16.mxu0 %v3212
    %3282 = vmatpush2.bf16.msra.mxu0 %v3211
    %3283 = vmatprep.subr.bf16.mxu0 %v3210
    %3284 = vmatpush2.bf16.msra.mxu0 %v3209
    %3285 = vmatprep.subr.bf16.mxu0 %v3208
    %3286 = vmatpush2.bf16.msra.mxu0 %v3207
    %3287 = vmatprep.mubr.bf16.mxu0 %v3092
    %3288 = vmatmul.mubr.bf16.gmra.mxu0 %v3091
    %v3289 = vpop.f32.mrf.mxu0
    %v3290 = vadd.f32 %v3078, %v3289
    %v3291 = vpop.f32.mrf.mxu0
    %v3292 = vadd.f32 %v3082, %v3291
    %v3293 = vpop.f32.mrf.mxu0
    %v3294 = vadd.f32 %v3078, %v3293
    %v3295 = vpop.f32.mrf.mxu0
    %v3296 = vadd.f32 %v3082, %v3295
    %3297 = vdwg.mxu0
    %v3298 = vmax.f32 %v3290, 0.0
    %v3299 = vmax.f32 %v3292, 0.0
    %v3300 = vmax.f32 %v3294, 0.0
    %v3301 = vmax.f32 %v3296, 0.0
    %v3302 = vpack.c.bf16 %v3300, %v3298
    %v3303 = vpack.c.bf16 %v3301, %v3299
    %v3306 = vunpack.c.l.b16 %v3302
    %v3307 = vunpack.c.l.b16 %v3303
    %v3308 = vunpack.c.h.b16 %v3302
    %v3309 = vunpack.c.h.b16 %v3303
    %v3310 = vpack.c.b16 %v3307, %v3306
    %v3311 = vpack.c.b16 %v3309, %v3308
    %3314 = vst [vmem:[#allocation3] sm:$0xff] %v3310
    %3315 = vst [vmem:[#allocation3 + $0x8] sm:$0xff] %v3311
    %v3316 = vld [vmem:[#allocation3] sm:$0xff]
    %v3317 = vld [vmem:[#allocation3 + $0x8] sm:$0xff]
    %v3318 = vld [vmem:[#allocation13] sm:$0xf]
    %v3319 = vld [vmem:[#allocation13 + $0x4] sm:$0xf]
    %v3320 = vld [vmem:[#allocation13 + $0x8] sm:$0xf]
    %v3321 = vld [vmem:[#allocation13 + $0xc] sm:$0xf]
    %v3322 = vld [vmem:[#allocation13 + $0x10] sm:$0xf]
    %v3323 = vld [vmem:[#allocation13 + $0x14] sm:$0xf]
    %v3324 = vld [vmem:[#allocation13 + $0x18] sm:$0xf]
    %v3325 = vld [vmem:[#allocation13 + $0x1c] sm:$0xf]
    %v3326 = vld [vmem:[#allocation13 + $0x20] sm:$0xf]
    %v3327 = vld [vmem:[#allocation13 + $0x24] sm:$0xf]
    %v3328 = vld [vmem:[#allocation13 + $0x28] sm:$0xf]
    %v3329 = vld [vmem:[#allocation13 + $0x2c] sm:$0xf]
    %v3330 = vld [vmem:[#allocation13 + $0x30] sm:$0xf]
    %v3331 = vld [vmem:[#allocation13 + $0x34] sm:$0xf]
    %v3332 = vld [vmem:[#allocation13 + $0x38] sm:$0xf]
    %v3333 = vld [vmem:[#allocation13 + $0x3c] sm:$0xf]
    %v3334 = vld [vmem:[#allocation13 + $0x40] sm:$0xf]
    %v3335 = vld [vmem:[#allocation13 + $0x44] sm:$0xf]
    %v3336 = vld [vmem:[#allocation13 + $0x48] sm:$0xf]
    %v3337 = vld [vmem:[#allocation13 + $0x4c] sm:$0xf]
    %v3338 = vld [vmem:[#allocation13 + $0x50] sm:$0xf]
    %v3339 = vld [vmem:[#allocation13 + $0x54] sm:$0xf]
    %v3340 = vld [vmem:[#allocation13 + $0x58] sm:$0xf]
    %v3341 = vld [vmem:[#allocation13 + $0x5c] sm:$0xf]
    %v3342 = vld [vmem:[#allocation13 + $0x60] sm:$0xf]
    %v3343 = vld [vmem:[#allocation13 + $0x64] sm:$0xf]
    %v3344 = vld [vmem:[#allocation13 + $0x68] sm:$0xf]
    %v3345 = vld [vmem:[#allocation13 + $0x6c] sm:$0xf]
    %v3346 = vld [vmem:[#allocation13 + $0x70] sm:$0xf]
    %v3347 = vld [vmem:[#allocation13 + $0x74] sm:$0xf]
    %v3348 = vld [vmem:[#allocation13 + $0x78] sm:$0xf]
    %v3349 = vld [vmem:[#allocation13 + $0x7c] sm:$0xf]
    %v3350 = vld [vmem:[#allocation15] sm:$0x1]
    %v3352 = vlaneseq
    %v3353 = vshrl.u32 %v3352, 7
    %v3354 = vsub.s32 0, %v3353
    %v3355 = vrot.slane %v3350, %v3354
    %v3359 = vunpack.c.l.b16 %v3316
    %v3360 = vunpack.c.h.b16 %v3316
    %v3361 = vunpack.c.l.b16 %v3317
    %v3362 = vunpack.c.h.b16 %v3317
    %v3363 = vpack.c.b16 %v3361, %v3359
    %v3364 = vpack.c.b16 %v3362, %v3360
    %v3399 = vunpack.c.l.b16 %v3318
    %v3400 = vunpack.c.l.b16 %v3319
    %v3401 = vunpack.c.l.b16 %v3320
    %v3402 = vunpack.c.l.b16 %v3321
    %v3403 = vunpack.c.l.b16 %v3322
    %v3404 = vunpack.c.l.b16 %v3323
    %v3405 = vunpack.c.l.b16 %v3324
    %v3406 = vunpack.c.l.b16 %v3325
    %v3407 = vunpack.c.l.b16 %v3326
    %v3408 = vunpack.c.l.b16 %v3327
    %v3409 = vunpack.c.l.b16 %v3328
    %v3410 = vunpack.c.l.b16 %v3329
    %v3411 = vunpack.c.l.b16 %v3330
    %v3412 = vunpack.c.l.b16 %v3331
    %v3413 = vunpack.c.l.b16 %v3332
    %v3414 = vunpack.c.l.b16 %v3333
    %v3415 = vunpack.c.l.b16 %v3334
    %v3416 = vunpack.c.l.b16 %v3335
    %v3417 = vunpack.c.l.b16 %v3336
    %v3418 = vunpack.c.l.b16 %v3337
    %v3419 = vunpack.c.l.b16 %v3338
    %v3420 = vunpack.c.l.b16 %v3339
    %v3421 = vunpack.c.l.b16 %v3340
    %v3422 = vunpack.c.l.b16 %v3341
    %v3423 = vunpack.c.l.b16 %v3342
    %v3424 = vunpack.c.l.b16 %v3343
    %v3425 = vunpack.c.l.b16 %v3344
    %v3426 = vunpack.c.l.b16 %v3345
    %v3427 = vunpack.c.l.b16 %v3346
    %v3428 = vunpack.c.l.b16 %v3347
    %v3429 = vunpack.c.l.b16 %v3348
    %v3430 = vunpack.c.l.b16 %v3349
    %v3431 = vpack.c.b16 %v3400, %v3399
    %v3432 = vpack.c.b16 %v3402, %v3401
    %v3433 = vpack.c.b16 %v3404, %v3403
    %v3434 = vpack.c.b16 %v3406, %v3405
    %v3435 = vpack.c.b16 %v3408, %v3407
    %v3436 = vpack.c.b16 %v3410, %v3409
    %v3437 = vpack.c.b16 %v3412, %v3411
    %v3438 = vpack.c.b16 %v3414, %v3413
    %v3439 = vpack.c.b16 %v3416, %v3415
    %v3440 = vpack.c.b16 %v3418, %v3417
    %v3441 = vpack.c.b16 %v3420, %v3419
    %v3442 = vpack.c.b16 %v3422, %v3421
    %v3443 = vpack.c.b16 %v3424, %v3423
    %v3444 = vpack.c.b16 %v3426, %v3425
    %v3445 = vpack.c.b16 %v3428, %v3427
    %v3446 = vpack.c.b16 %v3430, %v3429
    %3463 = vmatprep.subr.bf16.mxu0 0
    %3464 = vmatpush1.bf16.msra.mxu0 %v3438
    %3465 = vmatprep.subr.bf16.mxu0 0
    %3466 = vmatpush1.bf16.msra.mxu0 %v3437
    %3467 = vmatprep.subr.bf16.mxu0 0
    %3468 = vmatpush1.bf16.msra.mxu0 %v3436
    %3469 = vmatprep.subr.bf16.mxu0 0
    %3470 = vmatpush1.bf16.msra.mxu0 %v3435
    %3471 = vmatprep.subr.bf16.mxu0 0
    %3472 = vmatpush1.bf16.msra.mxu0 %v3434
    %3473 = vmatprep.subr.bf16.mxu0 0
    %3474 = vmatpush1.bf16.msra.mxu0 %v3433
    %3475 = vmatprep.subr.bf16.mxu0 0
    %3476 = vmatpush1.bf16.msra.mxu0 %v3432
    %3477 = vmatprep.subr.bf16.mxu0 0
    %3478 = vmatpush1.bf16.msra.mxu0 %v3431
    %3479 = vmatprep.subr.bf16.mxu0 0
    %3480 = vmatpush2.bf16.msra.mxu0 %v3446
    %3481 = vmatprep.subr.bf16.mxu0 0
    %3482 = vmatpush2.bf16.msra.mxu0 %v3445
    %3483 = vmatprep.subr.bf16.mxu0 0
    %3484 = vmatpush2.bf16.msra.mxu0 %v3444
    %3485 = vmatprep.subr.bf16.mxu0 0
    %3486 = vmatpush2.bf16.msra.mxu0 %v3443
    %3487 = vmatprep.subr.bf16.mxu0 0
    %3488 = vmatpush2.bf16.msra.mxu0 %v3442
    %3489 = vmatprep.subr.bf16.mxu0 0
    %3490 = vmatpush2.bf16.msra.mxu0 %v3441
    %3491 = vmatprep.subr.bf16.mxu0 0
    %3492 = vmatpush2.bf16.msra.mxu0 %v3440
    %3493 = vmatprep.subr.bf16.mxu0 0
    %3494 = vmatpush2.bf16.msra.mxu0 %v3439
    %3495 = vmatprep.mubr.bf16.mxu0 %v3364
    %3496 = vmatmul.mubr.bf16.gmra.mxu0 %v3363
    %v3497 = vpop.f32.mrf.mxu0
    %v3498 = vadd.f32 %v3355, %v3497
    %v3499 = vpop.f32.mrf.mxu0
    %v3500 = vpop.f32.mrf.mxu0
    %v3501 = vadd.f32 %v3355, %v3500
    %v3502 = vpop.f32.mrf.mxu0
    %3503 = vdwg.mxu0
    %v3504 = vpack.c.bf16 %v3501, %v3498
    %v3506 = vunpack.c.l.b16 %v3504
    %v3507 = vunpack.c.h.b16 %v3504
    %v3508 = vpack.c.b16 %v3506, %v3506
    %v3509 = vpack.c.b16 %v3507, %v3507
    %3512 = vst [vmem:[#allocation16] sm:$0xf] %v3508
    %3513 = vst [vmem:[#allocation16 + $0x4] sm:$0xf] %v3509
    // Predicated region
    $region58: #{tpu_custom_call.1} parent=1 // pred_check
      _
    $region59: #{tpu_custom_call.1} parent=1 // pred_check_branch
      %3515 = sbr.rel (0) target = $region61
    $region60: #{tpu_custom_call.1} parent=1 // pred_region
      %s3517 = ssub.s32 128, 128
      %3518 = vsyncadd [#allocation6], %s3517
      %s3519 = sshll.u32 [#allocation16], 4
      %s3520 = int_to_ptr.vmem [resolvable:$true] %s3519
      %3525 = dma.vmem_to_hbm [thread:$0]  %s3520, 128, %s7, [#allocation6], 64, 64, 4
    $region61: #{tpu_custom_call.1} parent=1 // pred_fallthru
      _
    // Predicated region
    $region62: #{tpu_custom_call.1} parent=1 // pred_check
      _
    $region63: #{tpu_custom_call.1} parent=1 // pred_check_branch
      %3527 = sbr.rel (0) target = $region65
    $region64: #{tpu_custom_call.1} parent=1 // pred_region
      %3528 = dma.done [#allocation6], 128
    $region65: #{tpu_custom_call.1} parent=1 // pred_fallthru
      _
    %3529 = vsyncpa [#allocation5], 1
    %3530 = vsyncpa [#allocation8], 1
    %3531 = vsyncpa [#allocation11], 1
    %3532 = vsyncpa [#allocation14], 1
    %3533 = vsyncpa [#allocation6], 1

</llo_original>
